<compile_context>
chip_gen: v5e
topology: v5e:2x2
jax: 0.10.0
libtpu: 0.0.40
codegen_flags: <defaults>
</compile_context>

<pallas_src>
import functools

import numpy as np
import jax
import jax.numpy as jnp
from jax.experimental import pallas as pl
from jax.experimental.pallas import tpu as pltpu


# ----------------------------- Pallas kernel --------------------------------
def _fused_decoder_kernel(*refs, num_layers, elu_dtype):
    """refs = (x_ref, w0_ref, b0_ref, ..., w{L-1}_ref, b{L-1}_ref, o_ref).

    Chain of L linears over the flattened node tensor; F.elu after every
    layer except the last (layer 0 already has the original decoder layer 0
    folded in, so its ELU is the original "after first SpiralConv" ELU).
    """
    x_ref = refs[0]
    o_ref = refs[-1]

    h = x_ref[...].astype(jnp.float32)
    for l in range(num_layers):
        w = refs[1 + 2 * l][...]
        b = refs[2 + 2 * l][...]
        dot_kwargs = dict(preferred_element_type=jnp.float32)
        if w.dtype == jnp.float32:
            # exact f32 matmul when running the f32 reference-check path
            dot_kwargs["precision"] = jax.lax.Precision.HIGHEST
        h = jnp.dot(h.astype(w.dtype), w, **dot_kwargs) + b.astype(jnp.float32)
        if l < num_layers - 1:
            # F.elu (alpha=1). Clamp so the discarded branch never overflows.
            hn = h.astype(elu_dtype)
            hn = jnp.where(hn > 0, hn, jnp.exp(jnp.minimum(hn, 0.0)) - 1.0)
            h = hn.astype(jnp.float32)
    o_ref[...] = h.astype(o_ref.dtype)


def _round_up(x, m):
    return ((x + m - 1) // m) * m


def _has_bf16_vpu():
    """bf16 VPU/EUP exists on v6e/v7x, not on v5e and older."""
    try:
        kind = jax.devices()[0].device_kind.lower()
    except Exception:
        return False
    return not any(f"v{n}" in kind for n in (2, 3, 4, 5))


def kpts_decoder_pallas(x, fused_params, num_kpts, kpt_channels, *,
                        block_m=1024, elu_dtype=None):
    """Fused forward.  x:(bs, features); fused_params: [(W, b_2d), ...] per layer."""
    M, K = x.shape
    out_n = num_kpts * kpt_channels
    if elu_dtype is None:
        elu_dtype = jnp.bfloat16 if _has_bf16_vpu() else jnp.float32

    # Pad the batch to a multiple of 8 sublanes (also covers tiny batches).
    M_pad = _round_up(max(M, 8), 8)
    if M_pad != M:
        x = jnp.pad(x, ((0, M_pad - M), (0, 0)))

    # Big tiles amortize the ~0.35us/step pipeline overhead, but keep >=2
    # grid steps when possible so both TensorCores on v7x get work.
    bm = min(_round_up(block_m, 8), M_pad)
    if M_pad >= 16 and pl.cdiv(M_pad, bm) < 2:
        bm = _round_up(pl.cdiv(M_pad, 2), 8)
    grid = (pl.cdiv(M_pad, bm),)

    in_specs = [pl.BlockSpec((bm, K), lambda i: (i, 0))]
    flat_args = [x]
    for (w, b) in fused_params:
        # Constant index_map -> weights/biases stay VMEM-resident across steps.
        in_specs.append(pl.BlockSpec(w.shape, lambda i: (0, 0)))
        in_specs.append(pl.BlockSpec(b.shape, lambda i: (0, 0)))
        flat_args += [w, b]

    out = pl.pallas_call(
        functools.partial(_fused_decoder_kernel,
                          num_layers=len(fused_params), elu_dtype=elu_dtype),
        out_shape=jax.ShapeDtypeStruct((M_pad, out_n), x.dtype),
        grid=grid,
        in_specs=in_specs,
        out_specs=pl.BlockSpec((bm, out_n), lambda i: (i, 0)),
        compiler_params=pltpu.CompilerParams(dimension_semantics=("parallel",)),
    )(*flat_args)
    return out[:M].reshape(M, num_kpts, kpt_channels)


# ------------------------- parameter construction ---------------------------
def create_graph(num_nodes: int) -> np.ndarray:
    adjacency = []
    for ii in range(num_nodes):
        x = list(range(num_nodes))
        x.insert(0, x.pop(ii))
        adjacency.append(x)
    return np.array(adjacency, dtype=np.int32)


def xavier_uniform(key, out_features, in_features):
    # torch.nn.init.xavier_uniform_ on a (out, in) weight; stored here as (in, out).
    a = float(np.sqrt(6.0 / (in_features + out_features)))
    return jax.random.uniform(
        key, (in_features, out_features), jnp.float32, minval=-a, maxval=a)


def init_params(key, features_size, kpt_channels, gcn_channels, num_kpts):
    """Raw (w, b) params stored (in, out), mirroring kpts_decoder.init_gcn (tsteps=1)."""
    params = []
    keys = jax.random.split(key, len(gcn_channels) + 3)

    # decoder_layers[0]: nn.Linear default init (uniform weight + uniform bias).
    out0 = num_kpts * gcn_channels[-1]
    bound = 1.0 / float(np.sqrt(features_size))
    w0 = jax.random.uniform(keys[0], (features_size, out0), jnp.float32,
                            minval=-bound, maxval=bound)
    b0 = jax.random.uniform(keys[1], (out0,), jnp.float32,
                            minval=-bound, maxval=bound)
    params.append((w0, b0))

    # SpiralConv stack: Linear(in_channels * seq_length, out_channels), bias=0.
    for idx in range(len(gcn_channels)):
        if idx == 0:
            c_in, c_out = gcn_channels[-1], gcn_channels[-1]
        else:
            c_in, c_out = gcn_channels[-idx], gcn_channels[-idx - 1]
        params.append((xavier_uniform(keys[idx + 2], c_out, c_in * num_kpts),
                       jnp.zeros((c_out,), jnp.float32)))

    # Final SpiralConv(gcn_channels[0] -> kpt_channels), bias=0.
    params.append((xavier_uniform(keys[-1], kpt_channels, gcn_channels[0] * num_kpts),
                   jnp.zeros((kpt_channels,), jnp.float32)))
    return params


def _spiral_big_weight(w, num_kpts):
    """Fold the spiral gather into one (N*C_in, N*C_out) block matrix.

    indices[i] = [i, 0, 1, ..., i-1, i+1, ..., N-1]  =>
        out[:, i, :] = sum_j x[:, j, :] @ W_block[pos(i, j)]
    with pos(i, i)=0, pos(i, j)=j+1 for j<i, pos(i, j)=j for j>i.
    """
    nc_in, c_out = w.shape
    c_in = nc_in // num_kpts
    w_blocks = w.reshape(num_kpts, c_in, c_out)
    w_big = np.zeros((num_kpts * c_in, num_kpts * c_out), dtype=np.float32)
    for i in range(num_kpts):          # output node
        for j in range(num_kpts):      # input node
            k = 0 if j == i else (j + 1 if j < i else j)
            w_big[j * c_in:(j + 1) * c_in, i * c_out:(i + 1) * c_out] = w_blocks[k]
    return w_big


def fold_spiral_params(params, num_kpts, weights_dtype=jnp.bfloat16):
    """One-time prep (all in f64-free numpy f32, zero runtime cost in-kernel):
      1. fold the spiral gather into every SpiralConv weight,
      2. fold decoder layer 0 into the first SpiralConv (no activation between),
      3. cast folded weights to `weights_dtype` (bf16 by default); biases
         are tiled to (1, N*C_out) and kept f32.
    """
    w0 = np.asarray(params[0][0], np.float32)
    b0 = np.asarray(params[0][1], np.float32)

    big = []
    for (w, b) in params[1:]:
        w_big = _spiral_big_weight(np.asarray(w, np.float32), num_kpts)
        b_big = np.tile(np.asarray(b, np.float32), num_kpts)
        big.append((w_big, b_big))

    # Layer-0 fusion: (x @ W0 + b0) @ W1 + b1 == x @ (W0 @ W1) + (b0 @ W1 + b1).
    w1, b1 = big[0]
    big[0] = (w0 @ w1, b0 @ w1 + b1)

    fused = []
    for (w, b) in big:
        fused.append((jnp.asarray(w, dtype=weights_dtype),
                      jnp.asarray(b.reshape(1, -1), dtype=jnp.float32)))
    return fused


# ------------------------------ pure-JAX reference ---------------------------
def reference_forward(params, spiral_indices, x, num_kpts, gcn_channels):
    """Mirrors the PyTorch forward (gather-based SpiralConv, F.elu), f32."""
    num_layers = len(params)
    flat_idx = spiral_indices.reshape(-1)
    hp = jax.lax.Precision.HIGHEST
    for i, (w, b) in enumerate(params):
        if i == 0:
            x = jnp.dot(x, w, precision=hp) + b
            x = x.reshape(-1, num_kpts, gcn_channels[-1])
        else:
            bs = x.shape[0]
            g = jnp.take(x, flat_idx, axis=1).reshape(bs, num_kpts, -1)
            y = jnp.einsum("bnd,do->bno", g, w, precision=hp) + b
            if i != num_layers - 1:
                y = jnp.where(y > 0, y, jnp.expm1(y))   # F.elu, alpha=1
            x = y
    return x


# --------------------------------- main --------------------------------------
if __name__ == "__main__":
    features_size = 32
    kpt_channels = 4
    gcn_channels = [16, 32]
    num_kpts = 8
    batch = 2

    key = jax.random.PRNGKey(0)
    kx, kp = jax.random.split(key)

    x = jax.random.normal(kx, (batch, features_size), dtype=jnp.float32)
    params = init_params(kp, features_size, kpt_channels, gcn_channels, num_kpts)
    spiral_indices = jnp.asarray(create_graph(num_kpts))

    ref = reference_forward(params, spiral_indices, x, num_kpts, gcn_channels)

    # 1) f32-weight path: tight check of the fold/fusion against the
    #    gather-based PyTorch-style reference.
    fused_f32 = fold_spiral_params(params, num_kpts, weights_dtype=jnp.float32)
    out_f32 = jax.block_until_ready(
        kpts_decoder_pallas(x, fused_f32, num_kpts, kpt_channels,
                            elu_dtype=jnp.float32))
    assert out_f32.shape == (batch, num_kpts, kpt_channels), out_f32.shape
    np.testing.assert_allclose(np.asarray(out_f32), np.asarray(ref),
                               rtol=1e-4, atol=1e-4)

    # 2) default perf path (bf16 folded weights, f32 accumulation); tolerance
    #    relaxed per review since weights are stored in bf16.
    fused_bf16 = fold_spiral_params(params, num_kpts, weights_dtype=jnp.bfloat16)
    out = jax.block_until_ready(
        kpts_decoder_pallas(x, fused_bf16, num_kpts, kpt_channels))
    assert out.shape == (batch, num_kpts, kpt_channels), out.shape
    np.testing.assert_allclose(np.asarray(out), np.asarray(ref),
                               rtol=2e-2, atol=2e-2)

    print("KERNEL_OK")
</pallas_src>

<mosaic_0001>
module attributes {stable_mosaic.version = 11 : i64} {
  func.func @_fused_decoder_kernel(%arg0: i32, %arg1: memref<8x32xf32, #tpu.memory_space<vmem>>, %arg2: memref<32x256xf32, #tpu.memory_space<vmem>>, %arg3: memref<1x256xf32, #tpu.memory_space<vmem>>, %arg4: memref<256x128xf32, #tpu.memory_space<vmem>>, %arg5: memref<1x128xf32, #tpu.memory_space<vmem>>, %arg6: memref<128x32xf32, #tpu.memory_space<vmem>>, %arg7: memref<1x32xf32, #tpu.memory_space<vmem>>, %arg8: memref<8x32xf32, #tpu.memory_space<vmem>>) attributes {dimension_semantics = [#tpu.dimension_semantics<parallel>], iteration_bounds = array<i64: 1>, scalar_prefetch = 0 : i64, scratch_operands = 0 : i64, tpu.core_type = #tpu.core_type<tc>, window_params = [{transform_indices = @transform_0, window_bounds = array<i64: 8, 32>}, {pipeline_mode = #tpu.pipeline_mode<synchronous>, transform_indices = @transform_1, window_bounds = array<i64: 32, 256>}, {pipeline_mode = #tpu.pipeline_mode<synchronous>, transform_indices = @transform_2, window_bounds = array<i64: 1, 256>}, {pipeline_mode = #tpu.pipeline_mode<synchronous>, transform_indices = @transform_3, window_bounds = array<i64: 256, 128>}, {pipeline_mode = #tpu.pipeline_mode<synchronous>, transform_indices = @transform_4, window_bounds = array<i64: 1, 128>}, {pipeline_mode = #tpu.pipeline_mode<synchronous>, transform_indices = @transform_5, window_bounds = array<i64: 128, 32>}, {pipeline_mode = #tpu.pipeline_mode<synchronous>, transform_indices = @transform_6, window_bounds = array<i64: 1, 32>}, {transform_indices = @transform_7, window_bounds = array<i64: 8, 32>}]} {
    %c0 = arith.constant 0 : index
    %c0_0 = arith.constant 0 : index
    %0 = vector.load %arg1[%c0, %c0_0] : memref<8x32xf32, #tpu.memory_space<vmem>>, vector<8x32xf32>
    %c0_1 = arith.constant 0 : index
    %c0_2 = arith.constant 0 : index
    %1 = vector.load %arg2[%c0_1, %c0_2] : memref<32x256xf32, #tpu.memory_space<vmem>>, vector<32x256xf32>
    %c0_3 = arith.constant 0 : index
    %c0_4 = arith.constant 0 : index
    %2 = vector.load %arg3[%c0_3, %c0_4] : memref<1x256xf32, #tpu.memory_space<vmem>>, vector<1x256xf32>
    %cst = arith.constant dense<0.000000e+00> : vector<8x256xf32>
    %3 = tpu.matmul %0, %1, %cst {dimension_numbers = #tpu.dot_dimension_numbers<[1], [0], [0], [1], [0, 0, 1, 1], [], []>, precision = #tpu.contract_precision<fp32>} : vector<8x32xf32>, vector<32x256xf32>, vector<8x256xf32> -> vector<8x256xf32>
    %4 = vector.broadcast %2 : vector<1x256xf32> to vector<8x256xf32>
    %5 = arith.addf %3, %4 : vector<8x256xf32>
    %cst_5 = arith.constant 0.000000e+00 : f32
    %6 = vector.broadcast %cst_5 : f32 to vector<8x256xf32>
    %7 = arith.cmpf ogt, %5, %6 : vector<8x256xf32>
    %cst_6 = arith.constant 0.000000e+00 : f32
    %8 = vector.broadcast %cst_6 : f32 to vector<8x256xf32>
    %9 = arith.minimumf %5, %8 : vector<8x256xf32>
    %10 = math.exp %9 : vector<8x256xf32>
    %cst_7 = arith.constant 1.000000e+00 : f32
    %11 = vector.broadcast %cst_7 : f32 to vector<8x256xf32>
    %12 = arith.subf %10, %11 : vector<8x256xf32>
    %13 = arith.select %7, %5, %12 : vector<8x256xi1>, vector<8x256xf32>
    %c0_8 = arith.constant 0 : index
    %c0_9 = arith.constant 0 : index
    %14 = vector.load %arg4[%c0_8, %c0_9] : memref<256x128xf32, #tpu.memory_space<vmem>>, vector<256x128xf32>
    %c0_10 = arith.constant 0 : index
    %c0_11 = arith.constant 0 : index
    %15 = vector.load %arg5[%c0_10, %c0_11] : memref<1x128xf32, #tpu.memory_space<vmem>>, vector<1x128xf32>
    %cst_12 = arith.constant dense<0.000000e+00> : vector<8x128xf32>
    %16 = tpu.matmul %13, %14, %cst_12 {dimension_numbers = #tpu.dot_dimension_numbers<[1], [0], [0], [1], [0, 0, 1, 1], [], []>, precision = #tpu.contract_precision<fp32>} : vector<8x256xf32>, vector<256x128xf32>, vector<8x128xf32> -> vector<8x128xf32>
    %17 = vector.broadcast %15 : vector<1x128xf32> to vector<8x128xf32>
    %18 = arith.addf %16, %17 : vector<8x128xf32>
    %cst_13 = arith.constant 0.000000e+00 : f32
    %19 = vector.broadcast %cst_13 : f32 to vector<8x128xf32>
    %20 = arith.cmpf ogt, %18, %19 : vector<8x128xf32>
    %cst_14 = arith.constant 0.000000e+00 : f32
    %21 = vector.broadcast %cst_14 : f32 to vector<8x128xf32>
    %22 = arith.minimumf %18, %21 : vector<8x128xf32>
    %23 = math.exp %22 : vector<8x128xf32>
    %cst_15 = arith.constant 1.000000e+00 : f32
    %24 = vector.broadcast %cst_15 : f32 to vector<8x128xf32>
    %25 = arith.subf %23, %24 : vector<8x128xf32>
    %26 = arith.select %20, %18, %25 : vector<8x128xi1>, vector<8x128xf32>
    %c0_16 = arith.constant 0 : index
    %c0_17 = arith.constant 0 : index
    %27 = vector.load %arg6[%c0_16, %c0_17] : memref<128x32xf32, #tpu.memory_space<vmem>>, vector<128x32xf32>
    %c0_18 = arith.constant 0 : index
    %c0_19 = arith.constant 0 : index
    %28 = vector.load %arg7[%c0_18, %c0_19] : memref<1x32xf32, #tpu.memory_space<vmem>>, vector<1x32xf32>
    %cst_20 = arith.constant dense<0.000000e+00> : vector<8x32xf32>
    %29 = tpu.matmul %26, %27, %cst_20 {dimension_numbers = #tpu.dot_dimension_numbers<[1], [0], [0], [1], [0, 0, 1, 1], [], []>, precision = #tpu.contract_precision<fp32>} : vector<8x128xf32>, vector<128x32xf32>, vector<8x32xf32> -> vector<8x32xf32>
    %30 = vector.broadcast %28 : vector<1x32xf32> to vector<8x32xf32>
    %31 = arith.addf %29, %30 : vector<8x32xf32>
    %c0_21 = arith.constant 0 : index
    %c0_22 = arith.constant 0 : index
    %32 = vector.load %arg8[%c0_21, %c0_22] : memref<8x32xf32, #tpu.memory_space<vmem>>, vector<8x32xf32>
    tpu.vector_store %arg8[%c0_21, %c0_22], %31 {strides = array<i32>} : memref<8x32xf32, #tpu.memory_space<vmem>>, vector<8x32xf32>,
    return
  }
  func.func @transform_0(%arg0: i32) -> (i32, i32) {
    %c0_i32 = arith.constant 0 : i32
    %c0_i32_0 = arith.constant 0 : i32
    return %arg0, %c0_i32 : i32, i32
  }
  func.func @transform_1(%arg0: i32) -> (i32, i32) {
    %c0_i32 = arith.constant 0 : i32
    %c0_i32_0 = arith.constant 0 : i32
    %c0_i32_1 = arith.constant 0 : i32
    return %c0_i32, %c0_i32_0 : i32, i32
  }
  func.func @transform_2(%arg0: i32) -> (i32, i32) {
    %c0_i32 = arith.constant 0 : i32
    %c0_i32_0 = arith.constant 0 : i32
    %c0_i32_1 = arith.constant 0 : i32
    return %c0_i32, %c0_i32_0 : i32, i32
  }
  func.func @transform_3(%arg0: i32) -> (i32, i32) {
    %c0_i32 = arith.constant 0 : i32
    %c0_i32_0 = arith.constant 0 : i32
    %c0_i32_1 = arith.constant 0 : i32
    return %c0_i32, %c0_i32_0 : i32, i32
  }
  func.func @transform_4(%arg0: i32) -> (i32, i32) {
    %c0_i32 = arith.constant 0 : i32
    %c0_i32_0 = arith.constant 0 : i32
    %c0_i32_1 = arith.constant 0 : i32
    return %c0_i32, %c0_i32_0 : i32, i32
  }
  func.func @transform_5(%arg0: i32) -> (i32, i32) {
    %c0_i32 = arith.constant 0 : i32
    %c0_i32_0 = arith.constant 0 : i32
    %c0_i32_1 = arith.constant 0 : i32
    return %c0_i32, %c0_i32_0 : i32, i32
  }
  func.func @transform_6(%arg0: i32) -> (i32, i32) {
    %c0_i32 = arith.constant 0 : i32
    %c0_i32_0 = arith.constant 0 : i32
    %c0_i32_1 = arith.constant 0 : i32
    return %c0_i32, %c0_i32_0 : i32, i32
  }
  func.func @transform_7(%arg0: i32) -> (i32, i32) {
    %c0_i32 = arith.constant 0 : i32
    %c0_i32_0 = arith.constant 0 : i32
    return %arg0, %c0_i32 : i32, i32
  }
}

</mosaic_0001>

<llo_original>
// kernel: tpu_custom_call.1
$region0: #{tpu_custom_call.1}
  #allocation0 [shape = 'u32[]', space=smem, size = 0x4, offset = 0x4, fixed_abs, tag = 'smem constant byte address 0x4 - core index']
  #allocation1 [shape = 'u32[72,128]{1,0:T(1,128)}', space=vmem, size = 0x9000, scoped, tag = 'internal scratch']
  %s0 = inlined_call_operand.vmem [shape: f32[8,32], index: 0, kind: input, shape index: {}]
  %s1 = inlined_call_operand.vmem [shape: f32[32,256], index: 1, kind: input, shape index: {}]
  %s2 = inlined_call_operand.vmem [shape: f32[1,256], index: 2, kind: input, shape index: {}]
  %s3 = inlined_call_operand.hbm [shape: f32[256,128], index: 3, kind: input, shape index: {}]
  %s4 = inlined_call_operand.vmem [shape: f32[1,128], index: 4, kind: input, shape index: {}]
  %s5 = inlined_call_operand.vmem [shape: f32[128,32], index: 5, kind: input, shape index: {}]
  %s6 = inlined_call_operand.vmem [shape: f32[1,32], index: 6, kind: input, shape index: {}]
  %s7 = inlined_call_operand.hbm [shape: f32[8,32], index: 7, kind: output, shape index: {}]
  %s8 = sld [smem:[#allocation0]]
  $region42: #{tpu_custom_call.1} parent=0
    _
  %s10 = ssub.s32 1, %s8
  %s11 = scalar_select 0, %s10, %s8
  $region1: #{tpu_custom_call.1} parent=0
    #allocation2 [shape = 'u8[131072]{0}', space=vmem, size = 0x20000, scoped, tag = 'input window, operand 3, single buffered']
    #allocation3 [shape = 's32[1]{0}', space=sflag, size = 0x4, scoped, tag = 'scoped memory for tpu_custom_call.1']
    #allocation4 [shape = 's32[1]{0}', space=sflag, size = 0x4, scoped, tag = 'scoped memory for tpu_custom_call.1']
    #allocation5 [shape = 'u8[4096]{0}', space=vmem, size = 0x1000, scoped, tag = 'output window, operand 0, single buffered']
    %12 = vsyncpa [#allocation3], 0
    %13 = vsyncpa [#allocation4], 0
    // Predicated region
    $region2: #{tpu_custom_call.1} parent=1 // pred_check
      _
    $region3: #{tpu_custom_call.1} parent=1 // pred_check_branch
      %15 = sbr.rel (0) target = $region5
    $region4: #{tpu_custom_call.1} parent=1 // pred_region
      _
    $region5: #{tpu_custom_call.1} parent=1 // pred_fallthru
      _
    // Predicated region
    $region6: #{tpu_custom_call.1} parent=1 // pred_check
      _
    $region7: #{tpu_custom_call.1} parent=1 // pred_check_branch
      %17 = sbr.rel (0) target = $region9
    $region8: #{tpu_custom_call.1} parent=1 // pred_region
      _
    $region9: #{tpu_custom_call.1} parent=1 // pred_fallthru
      _
    // Predicated region
    $region10: #{tpu_custom_call.1} parent=1 // pred_check
      _
    $region11: #{tpu_custom_call.1} parent=1 // pred_check_branch
      %19 = sbr.rel (0) target = $region13
    $region12: #{tpu_custom_call.1} parent=1 // pred_region
      _
    $region13: #{tpu_custom_call.1} parent=1 // pred_fallthru
      _
    // Predicated region
    $region14: #{tpu_custom_call.1} parent=1 // pred_check
      _
    $region15: #{tpu_custom_call.1} parent=1 // pred_check_branch
      %21 = sbr.rel (0) target = $region17
    $region16: #{tpu_custom_call.1} parent=1 // pred_region
      %23 = vsyncadd [#allocation3], 0
      %s24 = sshll.u32 %s3, 4
      %s25 = int_to_ptr.hbm [resolvable:$true] %s24
      %s26 = sshll.u32 [#allocation2], 4
      %s27 = int_to_ptr.vmem [resolvable:$true] %s26
      %32 = dma.hbm_to_vmem [thread:$0]  %s25, 4096, %s27, [#allocation3], 128, 128, 8
    $region17: #{tpu_custom_call.1} parent=1 // pred_fallthru
      _
    // Predicated region
    $region18: #{tpu_custom_call.1} parent=1 // pred_check
      _
    $region19: #{tpu_custom_call.1} parent=1 // pred_check_branch
      %34 = sbr.rel (0) target = $region21
    $region20: #{tpu_custom_call.1} parent=1 // pred_region
      _
    $region21: #{tpu_custom_call.1} parent=1 // pred_fallthru
      _
    // Predicated region
    $region22: #{tpu_custom_call.1} parent=1 // pred_check
      _
    $region23: #{tpu_custom_call.1} parent=1 // pred_check_branch
      %36 = sbr.rel (0) target = $region25
    $region24: #{tpu_custom_call.1} parent=1 // pred_region
      _
    $region25: #{tpu_custom_call.1} parent=1 // pred_fallthru
      _
    // Predicated region
    $region26: #{tpu_custom_call.1} parent=1 // pred_check
      _
    $region27: #{tpu_custom_call.1} parent=1 // pred_check_branch
      %38 = sbr.rel (0) target = $region29
    $region28: #{tpu_custom_call.1} parent=1 // pred_region
      _
    $region29: #{tpu_custom_call.1} parent=1 // pred_fallthru
      _
    // Predicated region
    $region30: #{tpu_custom_call.1} parent=1 // pred_check
      _
    $region31: #{tpu_custom_call.1} parent=1 // pred_check_branch
      %40 = sbr.rel (0) target = $region33
    $region32: #{tpu_custom_call.1} parent=1 // pred_region
      %42 = dma.done [#allocation3], 4096
    $region33: #{tpu_custom_call.1} parent=1 // pred_fallthru
      _
    %v43 = vld [vmem:[%s0] sm:$0xff]
    %v44 = vld [vmem:[%s1] sm:$0xff]
    %v45 = vld [vmem:[%s1 + $0x8] sm:$0xff]
    %v46 = vld [vmem:[%s1 + $0x10] sm:$0xff]
    %v47 = vld [vmem:[%s1 + $0x18] sm:$0xff]
    %v48 = vld [vmem:[%s1 + $0x20] sm:$0xff]
    %v49 = vld [vmem:[%s1 + $0x28] sm:$0xff]
    %v50 = vld [vmem:[%s1 + $0x30] sm:$0xff]
    %v51 = vld [vmem:[%s1 + $0x38] sm:$0xff]
    %v52 = vld [vmem:[%s2] sm:$0x3]
    %v54 = vperm.slane %v52, 0
    %v55 = vperm.slane %v52, 1
    %vm58 = vcmask 261120
    %v60 = vsel %vm58, %v43, 0
    %62 = vmatpush.msra.mxu0 0.0
    %63 = vmatpush.msra.mxu0 0.0
    %64 = vmatpush.msra.mxu0 0.0
    %65 = vmatpush.msra.mxu0 0.0
    %66 = vmatpush.msra.mxu0 0.0
    %67 = vmatpush.msra.mxu0 0.0
    %68 = vmatpush.msra.mxu0 0.0
    %69 = vmatpush.msra.mxu0 0.0
    %70 = vmatpush.msra.mxu0 0.0
    %71 = vmatpush.msra.mxu0 0.0
    %72 = vmatpush.msra.mxu0 0.0
    %73 = vmatpush.msra.mxu0 0.0
    %v74 = vand.u32 %v50, 4294901760
    %75 = vmatpush.msra.mxu0 %v74
    %v76 = vand.u32 %v48, 4294901760
    %77 = vmatpush.msra.mxu0 %v76
    %v78 = vand.u32 %v46, 4294901760
    %79 = vmatpush.msra.mxu0 %v78
    %v80 = vand.u32 %v44, 4294901760
    %81 = vmatpush.msra.mxu0 %v80
    %v82 = vand.u32 %v60, 4294901760
    %v83 = vsub.f32 %v60, %v82
    %v84 = vand.u32 %v83, 4294901760
    %v85 = vsub.f32 %v83, %v84
    %v86 = vand.u32 %v85, 4294901760
    %87 = vmatmul.f32.gmra.mxu0 %v86
    %v88 = vpop.f32.mrf.mxu0
    %v89 = vadd.f32 %v54, %v88
    %90 = vdwg.mxu0
    %91 = vmatpush.msra.mxu0 0.0
    %92 = vmatpush.msra.mxu0 0.0
    %93 = vmatpush.msra.mxu0 0.0
    %94 = vmatpush.msra.mxu0 0.0
    %95 = vmatpush.msra.mxu0 0.0
    %96 = vmatpush.msra.mxu0 0.0
    %97 = vmatpush.msra.mxu0 0.0
    %98 = vmatpush.msra.mxu0 0.0
    %99 = vmatpush.msra.mxu0 0.0
    %100 = vmatpush.msra.mxu0 0.0
    %101 = vmatpush.msra.mxu0 0.0
    %102 = vmatpush.msra.mxu0 0.0
    %v103 = vand.u32 %v50, 4294901760
    %v104 = vsub.f32 %v50, %v103
    %v105 = vand.u32 %v104, 4294901760
    %v106 = vsub.f32 %v104, %v105
    %v107 = vand.u32 %v106, 4294901760
    %108 = vmatpush.msra.mxu0 %v107
    %v109 = vand.u32 %v48, 4294901760
    %v110 = vsub.f32 %v48, %v109
    %v111 = vand.u32 %v110, 4294901760
    %v112 = vsub.f32 %v110, %v111
    %v113 = vand.u32 %v112, 4294901760
    %114 = vmatpush.msra.mxu0 %v113
    %v115 = vand.u32 %v46, 4294901760
    %v116 = vsub.f32 %v46, %v115
    %v117 = vand.u32 %v116, 4294901760
    %v118 = vsub.f32 %v116, %v117
    %v119 = vand.u32 %v118, 4294901760
    %120 = vmatpush.msra.mxu0 %v119
    %v121 = vand.u32 %v44, 4294901760
    %v122 = vsub.f32 %v44, %v121
    %v123 = vand.u32 %v122, 4294901760
    %v124 = vsub.f32 %v122, %v123
    %v125 = vand.u32 %v124, 4294901760
    %126 = vmatpush.msra.mxu0 %v125
    %v127 = vand.u32 %v60, 4294901760
    %128 = vmatmul.f32.gmra.mxu0 %v127
    %v129 = vpop.f32.mrf.mxu0
    %v130 = vadd.f32 %v89, %v129
    %131 = vdwg.mxu0
    %132 = vmatpush.msra.mxu0 0.0
    %133 = vmatpush.msra.mxu0 0.0
    %134 = vmatpush.msra.mxu0 0.0
    %135 = vmatpush.msra.mxu0 0.0
    %136 = vmatpush.msra.mxu0 0.0
    %137 = vmatpush.msra.mxu0 0.0
    %138 = vmatpush.msra.mxu0 0.0
    %139 = vmatpush.msra.mxu0 0.0
    %140 = vmatpush.msra.mxu0 0.0
    %141 = vmatpush.msra.mxu0 0.0
    %142 = vmatpush.msra.mxu0 0.0
    %143 = vmatpush.msra.mxu0 0.0
    %v144 = vand.u32 %v50, 4294901760
    %v145 = vsub.f32 %v50, %v144
    %146 = vmatpush.msra.mxu0 %v145
    %v147 = vand.u32 %v48, 4294901760
    %v148 = vsub.f32 %v48, %v147
    %149 = vmatpush.msra.mxu0 %v148
    %v150 = vand.u32 %v46, 4294901760
    %v151 = vsub.f32 %v46, %v150
    %152 = vmatpush.msra.mxu0 %v151
    %v153 = vand.u32 %v44, 4294901760
    %v154 = vsub.f32 %v44, %v153
    %155 = vmatpush.msra.mxu0 %v154
    %v156 = vand.u32 %v60, 4294901760
    %v157 = vsub.f32 %v60, %v156
    %158 = vmatmul.f32.gmra.mxu0 %v157
    %v159 = vpop.f32.mrf.mxu0
    %v160 = vadd.f32 %v130, %v159
    %161 = vdwg.mxu0
    %162 = vmatpush.msra.mxu0 0.0
    %163 = vmatpush.msra.mxu0 0.0
    %164 = vmatpush.msra.mxu0 0.0
    %165 = vmatpush.msra.mxu0 0.0
    %166 = vmatpush.msra.mxu0 0.0
    %167 = vmatpush.msra.mxu0 0.0
    %168 = vmatpush.msra.mxu0 0.0
    %169 = vmatpush.msra.mxu0 0.0
    %170 = vmatpush.msra.mxu0 0.0
    %171 = vmatpush.msra.mxu0 0.0
    %172 = vmatpush.msra.mxu0 0.0
    %173 = vmatpush.msra.mxu0 0.0
    %v174 = vand.u32 %v50, 4294901760
    %175 = vmatpush.msra.mxu0 %v174
    %v176 = vand.u32 %v48, 4294901760
    %177 = vmatpush.msra.mxu0 %v176
    %v178 = vand.u32 %v46, 4294901760
    %179 = vmatpush.msra.mxu0 %v178
    %v180 = vand.u32 %v44, 4294901760
    %181 = vmatpush.msra.mxu0 %v180
    %v182 = vand.u32 %v60, 4294901760
    %v183 = vsub.f32 %v60, %v182
    %v184 = vand.u32 %v183, 4294901760
    %185 = vmatmul.f32.gmra.mxu0 %v184
    %v186 = vpop.f32.mrf.mxu0
    %v187 = vadd.f32 %v160, %v186
    %188 = vdwg.mxu0
    %189 = vmatpush.msra.mxu0 0.0
    %190 = vmatpush.msra.mxu0 0.0
    %191 = vmatpush.msra.mxu0 0.0
    %192 = vmatpush.msra.mxu0 0.0
    %193 = vmatpush.msra.mxu0 0.0
    %194 = vmatpush.msra.mxu0 0.0
    %195 = vmatpush.msra.mxu0 0.0
    %196 = vmatpush.msra.mxu0 0.0
    %197 = vmatpush.msra.mxu0 0.0
    %198 = vmatpush.msra.mxu0 0.0
    %199 = vmatpush.msra.mxu0 0.0
    %200 = vmatpush.msra.mxu0 0.0
    %v201 = vand.u32 %v50, 4294901760
    %v202 = vsub.f32 %v50, %v201
    %v203 = vand.u32 %v202, 4294901760
    %204 = vmatpush.msra.mxu0 %v203
    %v205 = vand.u32 %v48, 4294901760
    %v206 = vsub.f32 %v48, %v205
    %v207 = vand.u32 %v206, 4294901760
    %208 = vmatpush.msra.mxu0 %v207
    %v209 = vand.u32 %v46, 4294901760
    %v210 = vsub.f32 %v46, %v209
    %v211 = vand.u32 %v210, 4294901760
    %212 = vmatpush.msra.mxu0 %v211
    %v213 = vand.u32 %v44, 4294901760
    %v214 = vsub.f32 %v44, %v213
    %v215 = vand.u32 %v214, 4294901760
    %216 = vmatpush.msra.mxu0 %v215
    %v217 = vand.u32 %v60, 4294901760
    %218 = vmatmul.f32.gmra.mxu0 %v217
    %v219 = vpop.f32.mrf.mxu0
    %v220 = vadd.f32 %v187, %v219
    %221 = vdwg.mxu0
    %222 = vmatpush.msra.mxu0 0.0
    %223 = vmatpush.msra.mxu0 0.0
    %224 = vmatpush.msra.mxu0 0.0
    %225 = vmatpush.msra.mxu0 0.0
    %226 = vmatpush.msra.mxu0 0.0
    %227 = vmatpush.msra.mxu0 0.0
    %228 = vmatpush.msra.mxu0 0.0
    %229 = vmatpush.msra.mxu0 0.0
    %230 = vmatpush.msra.mxu0 0.0
    %231 = vmatpush.msra.mxu0 0.0
    %232 = vmatpush.msra.mxu0 0.0
    %233 = vmatpush.msra.mxu0 0.0
    %v234 = vand.u32 %v50, 4294901760
    %235 = vmatpush.msra.mxu0 %v234
    %v236 = vand.u32 %v48, 4294901760
    %237 = vmatpush.msra.mxu0 %v236
    %v238 = vand.u32 %v46, 4294901760
    %239 = vmatpush.msra.mxu0 %v238
    %v240 = vand.u32 %v44, 4294901760
    %241 = vmatpush.msra.mxu0 %v240
    %v242 = vand.u32 %v60, 4294901760
    %243 = vmatmul.f32.gmra.mxu0 %v242
    %v244 = vpop.f32.mrf.mxu0
    %v245 = vadd.f32 %v220, %v244
    %246 = vdwg.mxu0
    %247 = vmatpush.msra.mxu0 0.0
    %248 = vmatpush.msra.mxu0 0.0
    %249 = vmatpush.msra.mxu0 0.0
    %250 = vmatpush.msra.mxu0 0.0
    %251 = vmatpush.msra.mxu0 0.0
    %252 = vmatpush.msra.mxu0 0.0
    %253 = vmatpush.msra.mxu0 0.0
    %254 = vmatpush.msra.mxu0 0.0
    %255 = vmatpush.msra.mxu0 0.0
    %256 = vmatpush.msra.mxu0 0.0
    %257 = vmatpush.msra.mxu0 0.0
    %258 = vmatpush.msra.mxu0 0.0
    %v259 = vand.u32 %v51, 4294901760
    %260 = vmatpush.msra.mxu0 %v259
    %v261 = vand.u32 %v49, 4294901760
    %262 = vmatpush.msra.mxu0 %v261
    %v263 = vand.u32 %v47, 4294901760
    %264 = vmatpush.msra.mxu0 %v263
    %v265 = vand.u32 %v45, 4294901760
    %266 = vmatpush.msra.mxu0 %v265
    %v267 = vand.u32 %v60, 4294901760
    %v268 = vsub.f32 %v60, %v267
    %v269 = vand.u32 %v268, 4294901760
    %v270 = vsub.f32 %v268, %v269
    %v271 = vand.u32 %v270, 4294901760
    %272 = vmatmul.f32.gmra.mxu0 %v271
    %v273 = vpop.f32.mrf.mxu0
    %v274 = vadd.f32 %v55, %v273
    %275 = vdwg.mxu0
    %276 = vmatpush.msra.mxu0 0.0
    %277 = vmatpush.msra.mxu0 0.0
    %278 = vmatpush.msra.mxu0 0.0
    %279 = vmatpush.msra.mxu0 0.0
    %280 = vmatpush.msra.mxu0 0.0
    %281 = vmatpush.msra.mxu0 0.0
    %282 = vmatpush.msra.mxu0 0.0
    %283 = vmatpush.msra.mxu0 0.0
    %284 = vmatpush.msra.mxu0 0.0
    %285 = vmatpush.msra.mxu0 0.0
    %286 = vmatpush.msra.mxu0 0.0
    %287 = vmatpush.msra.mxu0 0.0
    %v288 = vand.u32 %v51, 4294901760
    %v289 = vsub.f32 %v51, %v288
    %v290 = vand.u32 %v289, 4294901760
    %v291 = vsub.f32 %v289, %v290
    %v292 = vand.u32 %v291, 4294901760
    %293 = vmatpush.msra.mxu0 %v292
    %v294 = vand.u32 %v49, 4294901760
    %v295 = vsub.f32 %v49, %v294
    %v296 = vand.u32 %v295, 4294901760
    %v297 = vsub.f32 %v295, %v296
    %v298 = vand.u32 %v297, 4294901760
    %299 = vmatpush.msra.mxu0 %v298
    %v300 = vand.u32 %v47, 4294901760
    %v301 = vsub.f32 %v47, %v300
    %v302 = vand.u32 %v301, 4294901760
    %v303 = vsub.f32 %v301, %v302
    %v304 = vand.u32 %v303, 4294901760
    %305 = vmatpush.msra.mxu0 %v304
    %v306 = vand.u32 %v45, 4294901760
    %v307 = vsub.f32 %v45, %v306
    %v308 = vand.u32 %v307, 4294901760
    %v309 = vsub.f32 %v307, %v308
    %v310 = vand.u32 %v309, 4294901760
    %311 = vmatpush.msra.mxu0 %v310
    %v312 = vand.u32 %v60, 4294901760
    %313 = vmatmul.f32.gmra.mxu0 %v312
    %v314 = vpop.f32.mrf.mxu0
    %v315 = vadd.f32 %v274, %v314
    %316 = vdwg.mxu0
    %317 = vmatpush.msra.mxu0 0.0
    %318 = vmatpush.msra.mxu0 0.0
    %319 = vmatpush.msra.mxu0 0.0
    %320 = vmatpush.msra.mxu0 0.0
    %321 = vmatpush.msra.mxu0 0.0
    %322 = vmatpush.msra.mxu0 0.0
    %323 = vmatpush.msra.mxu0 0.0
    %324 = vmatpush.msra.mxu0 0.0
    %325 = vmatpush.msra.mxu0 0.0
    %326 = vmatpush.msra.mxu0 0.0
    %327 = vmatpush.msra.mxu0 0.0
    %328 = vmatpush.msra.mxu0 0.0
    %v329 = vand.u32 %v51, 4294901760
    %v330 = vsub.f32 %v51, %v329
    %331 = vmatpush.msra.mxu0 %v330
    %v332 = vand.u32 %v49, 4294901760
    %v333 = vsub.f32 %v49, %v332
    %334 = vmatpush.msra.mxu0 %v333
    %v335 = vand.u32 %v47, 4294901760
    %v336 = vsub.f32 %v47, %v335
    %337 = vmatpush.msra.mxu0 %v336
    %v338 = vand.u32 %v45, 4294901760
    %v339 = vsub.f32 %v45, %v338
    %340 = vmatpush.msra.mxu0 %v339
    %v341 = vand.u32 %v60, 4294901760
    %v342 = vsub.f32 %v60, %v341
    %343 = vmatmul.f32.gmra.mxu0 %v342
    %v344 = vpop.f32.mrf.mxu0
    %v345 = vadd.f32 %v315, %v344
    %346 = vdwg.mxu0
    %347 = vmatpush.msra.mxu0 0.0
    %348 = vmatpush.msra.mxu0 0.0
    %349 = vmatpush.msra.mxu0 0.0
    %350 = vmatpush.msra.mxu0 0.0
    %351 = vmatpush.msra.mxu0 0.0
    %352 = vmatpush.msra.mxu0 0.0
    %353 = vmatpush.msra.mxu0 0.0
    %354 = vmatpush.msra.mxu0 0.0
    %355 = vmatpush.msra.mxu0 0.0
    %356 = vmatpush.msra.mxu0 0.0
    %357 = vmatpush.msra.mxu0 0.0
    %358 = vmatpush.msra.mxu0 0.0
    %v359 = vand.u32 %v51, 4294901760
    %360 = vmatpush.msra.mxu0 %v359
    %v361 = vand.u32 %v49, 4294901760
    %362 = vmatpush.msra.mxu0 %v361
    %v363 = vand.u32 %v47, 4294901760
    %364 = vmatpush.msra.mxu0 %v363
    %v365 = vand.u32 %v45, 4294901760
    %366 = vmatpush.msra.mxu0 %v365
    %v367 = vand.u32 %v60, 4294901760
    %v368 = vsub.f32 %v60, %v367
    %v369 = vand.u32 %v368, 4294901760
    %370 = vmatmul.f32.gmra.mxu0 %v369
    %v371 = vpop.f32.mrf.mxu0
    %v372 = vadd.f32 %v345, %v371
    %373 = vdwg.mxu0
    %374 = vmatpush.msra.mxu0 0.0
    %375 = vmatpush.msra.mxu0 0.0
    %376 = vmatpush.msra.mxu0 0.0
    %377 = vmatpush.msra.mxu0 0.0
    %378 = vmatpush.msra.mxu0 0.0
    %379 = vmatpush.msra.mxu0 0.0
    %380 = vmatpush.msra.mxu0 0.0
    %381 = vmatpush.msra.mxu0 0.0
    %382 = vmatpush.msra.mxu0 0.0
    %383 = vmatpush.msra.mxu0 0.0
    %384 = vmatpush.msra.mxu0 0.0
    %385 = vmatpush.msra.mxu0 0.0
    %v386 = vand.u32 %v51, 4294901760
    %v387 = vsub.f32 %v51, %v386
    %v388 = vand.u32 %v387, 4294901760
    %389 = vmatpush.msra.mxu0 %v388
    %v390 = vand.u32 %v49, 4294901760
    %v391 = vsub.f32 %v49, %v390
    %v392 = vand.u32 %v391, 4294901760
    %393 = vmatpush.msra.mxu0 %v392
    %v394 = vand.u32 %v47, 4294901760
    %v395 = vsub.f32 %v47, %v394
    %v396 = vand.u32 %v395, 4294901760
    %397 = vmatpush.msra.mxu0 %v396
    %v398 = vand.u32 %v45, 4294901760
    %v399 = vsub.f32 %v45, %v398
    %v400 = vand.u32 %v399, 4294901760
    %401 = vmatpush.msra.mxu0 %v400
    %v402 = vand.u32 %v60, 4294901760
    %403 = vmatmul.f32.gmra.mxu0 %v402
    %v404 = vpop.f32.mrf.mxu0
    %v405 = vadd.f32 %v372, %v404
    %406 = vdwg.mxu0
    %407 = vmatpush.msra.mxu0 0.0
    %408 = vmatpush.msra.mxu0 0.0
    %409 = vmatpush.msra.mxu0 0.0
    %410 = vmatpush.msra.mxu0 0.0
    %411 = vmatpush.msra.mxu0 0.0
    %412 = vmatpush.msra.mxu0 0.0
    %413 = vmatpush.msra.mxu0 0.0
    %414 = vmatpush.msra.mxu0 0.0
    %415 = vmatpush.msra.mxu0 0.0
    %416 = vmatpush.msra.mxu0 0.0
    %417 = vmatpush.msra.mxu0 0.0
    %418 = vmatpush.msra.mxu0 0.0
    %v419 = vand.u32 %v51, 4294901760
    %420 = vmatpush.msra.mxu0 %v419
    %v421 = vand.u32 %v49, 4294901760
    %422 = vmatpush.msra.mxu0 %v421
    %v423 = vand.u32 %v47, 4294901760
    %424 = vmatpush.msra.mxu0 %v423
    %v425 = vand.u32 %v45, 4294901760
    %426 = vmatpush.msra.mxu0 %v425
    %v427 = vand.u32 %v60, 4294901760
    %428 = vmatmul.f32.gmra.mxu0 %v427
    %v429 = vpop.f32.mrf.mxu0
    %v430 = vadd.f32 %v405, %v429
    %431 = vdwg.mxu0
    %vm432 = vcmp.gt.f32.partialorder %v245, 0.0
    %vm433 = vcmp.gt.f32.partialorder %v430, 0.0
    %v434 = vmin.f32 %v245, 0.0
    %v435 = vmin.f32 %v430, 0.0
    %v436 = vmul.f32 %v434, 1.442695
    %v437 = vpow.pop %v436
    %v438 = vmul.f32 %v435, 1.442695
    %v439 = vpow.pop %v438
    %v440 = vsub.f32 %v437, 1.0
    %v441 = vsub.f32 %v439, 1.0
    %v442 = vsel %vm432, %v245, %v440
    %v443 = vsel %vm433, %v430, %v441
    %v444 = vld [vmem:[#allocation2] sm:$0xff]
    %v445 = vld [vmem:[#allocation2 + $0x8] sm:$0xff]
    %v446 = vld [vmem:[#allocation2 + $0x10] sm:$0xff]
    %v447 = vld [vmem:[#allocation2 + $0x18] sm:$0xff]
    %v448 = vld [vmem:[#allocation2 + $0x20] sm:$0xff]
    %v449 = vld [vmem:[#allocation2 + $0x28] sm:$0xff]
    %v450 = vld [vmem:[#allocation2 + $0x30] sm:$0xff]
    %v451 = vld [vmem:[#allocation2 + $0x38] sm:$0xff]
    %v452 = vld [vmem:[#allocation2 + $0x40] sm:$0xff]
    %v453 = vld [vmem:[#allocation2 + $0x48] sm:$0xff]
    %v454 = vld [vmem:[#allocation2 + $0x50] sm:$0xff]
    %v455 = vld [vmem:[#allocation2 + $0x58] sm:$0xff]
    %v456 = vld [vmem:[#allocation2 + $0x60] sm:$0xff]
    %v457 = vld [vmem:[#allocation2 + $0x68] sm:$0xff]
    %v458 = vld [vmem:[#allocation2 + $0x70] sm:$0xff]
    %v459 = vld [vmem:[#allocation2 + $0x78] sm:$0xff]
    %v460 = vld [vmem:[#allocation2 + $0x80] sm:$0xff]
    %v461 = vld [vmem:[#allocation2 + $0x88] sm:$0xff]
    %v462 = vld [vmem:[#allocation2 + $0x90] sm:$0xff]
    %v463 = vld [vmem:[#allocation2 + $0x98] sm:$0xff]
    %v464 = vld [vmem:[#allocation2 + $0xa0] sm:$0xff]
    %v465 = vld [vmem:[#allocation2 + $0xa8] sm:$0xff]
    %v466 = vld [vmem:[#allocation2 + $0xb0] sm:$0xff]
    %v467 = vld [vmem:[#allocation2 + $0xb8] sm:$0xff]
    %v468 = vld [vmem:[#allocation2 + $0xc0] sm:$0xff]
    %v469 = vld [vmem:[#allocation2 + $0xc8] sm:$0xff]
    %v470 = vld [vmem:[#allocation2 + $0xd0] sm:$0xff]
    %v471 = vld [vmem:[#allocation2 + $0xd8] sm:$0xff]
    %v472 = vld [vmem:[#allocation2 + $0xe0] sm:$0xff]
    %v473 = vld [vmem:[#allocation2 + $0xe8] sm:$0xff]
    %v474 = vld [vmem:[#allocation2 + $0xf0] sm:$0xff]
    %v475 = vld [vmem:[#allocation2 + $0xf8] sm:$0xff]
    %v476 = vld [vmem:[%s4] sm:$0x1]
    %v478 = vperm.slane %v476, 0
    %v480 = vand.u32 %v459, 4294901760
    %481 = vmatpush.msra.mxu0 %v480
    %v482 = vand.u32 %v458, 4294901760
    %483 = vmatpush.msra.mxu0 %v482
    %v484 = vand.u32 %v457, 4294901760
    %485 = vmatpush.msra.mxu0 %v484
    %v486 = vand.u32 %v456, 4294901760
    %487 = vmatpush.msra.mxu0 %v486
    %v488 = vand.u32 %v455, 4294901760
    %489 = vmatpush.msra.mxu0 %v488
    %v490 = vand.u32 %v454, 4294901760
    %491 = vmatpush.msra.mxu0 %v490
    %v492 = vand.u32 %v453, 4294901760
    %493 = vmatpush.msra.mxu0 %v492
    %v494 = vand.u32 %v452, 4294901760
    %495 = vmatpush.msra.mxu0 %v494
    %v496 = vand.u32 %v451, 4294901760
    %497 = vmatpush.msra.mxu0 %v496
    %v498 = vand.u32 %v450, 4294901760
    %499 = vmatpush.msra.mxu0 %v498
    %v500 = vand.u32 %v449, 4294901760
    %501 = vmatpush.msra.mxu0 %v500
    %v502 = vand.u32 %v448, 4294901760
    %503 = vmatpush.msra.mxu0 %v502
    %v504 = vand.u32 %v447, 4294901760
    %505 = vmatpush.msra.mxu0 %v504
    %v506 = vand.u32 %v446, 4294901760
    %507 = vmatpush.msra.mxu0 %v506
    %v508 = vand.u32 %v445, 4294901760
    %509 = vmatpush.msra.mxu0 %v508
    %v510 = vand.u32 %v444, 4294901760
    %511 = vmatpush.msra.mxu0 %v510
    %v512 = vand.u32 %v442, 4294901760
    %v513 = vsub.f32 %v442, %v512
    %v514 = vand.u32 %v513, 4294901760
    %v515 = vsub.f32 %v513, %v514
    %v516 = vand.u32 %v515, 4294901760
    %517 = vmatmul.f32.gmra.mxu0 %v516
    %v518 = vpop.f32.mrf.mxu0
    %v519 = vadd.f32 %v478, %v518
    %520 = vdwg.mxu0
    %v521 = vand.u32 %v459, 4294901760
    %v522 = vsub.f32 %v459, %v521
    %v523 = vand.u32 %v522, 4294901760
    %v524 = vsub.f32 %v522, %v523
    %v525 = vand.u32 %v524, 4294901760
    %526 = vmatpush.msra.mxu0 %v525
    %v527 = vand.u32 %v458, 4294901760
    %v528 = vsub.f32 %v458, %v527
    %v529 = vand.u32 %v528, 4294901760
    %v530 = vsub.f32 %v528, %v529
    %v531 = vand.u32 %v530, 4294901760
    %532 = vmatpush.msra.mxu0 %v531
    %v533 = vand.u32 %v457, 4294901760
    %v534 = vsub.f32 %v457, %v533
    %v535 = vand.u32 %v534, 4294901760
    %v536 = vsub.f32 %v534, %v535
    %v537 = vand.u32 %v536, 4294901760
    %538 = vmatpush.msra.mxu0 %v537
    %v539 = vand.u32 %v456, 4294901760
    %v540 = vsub.f32 %v456, %v539
    %v541 = vand.u32 %v540, 4294901760
    %v542 = vsub.f32 %v540, %v541
    %v543 = vand.u32 %v542, 4294901760
    %544 = vmatpush.msra.mxu0 %v543
    %v545 = vand.u32 %v455, 4294901760
    %v546 = vsub.f32 %v455, %v545
    %v547 = vand.u32 %v546, 4294901760
    %v548 = vsub.f32 %v546, %v547
    %v549 = vand.u32 %v548, 4294901760
    %550 = vmatpush.msra.mxu0 %v549
    %v551 = vand.u32 %v454, 4294901760
    %v552 = vsub.f32 %v454, %v551
    %v553 = vand.u32 %v552, 4294901760
    %v554 = vsub.f32 %v552, %v553
    %v555 = vand.u32 %v554, 4294901760
    %556 = vmatpush.msra.mxu0 %v555
    %v557 = vand.u32 %v453, 4294901760
    %v558 = vsub.f32 %v453, %v557
    %v559 = vand.u32 %v558, 4294901760
    %v560 = vsub.f32 %v558, %v559
    %v561 = vand.u32 %v560, 4294901760
    %562 = vmatpush.msra.mxu0 %v561
    %v563 = vand.u32 %v452, 4294901760
    %v564 = vsub.f32 %v452, %v563
    %v565 = vand.u32 %v564, 4294901760
    %v566 = vsub.f32 %v564, %v565
    %v567 = vand.u32 %v566, 4294901760
    %568 = vmatpush.msra.mxu0 %v567
    %v569 = vand.u32 %v451, 4294901760
    %v570 = vsub.f32 %v451, %v569
    %v571 = vand.u32 %v570, 4294901760
    %v572 = vsub.f32 %v570, %v571
    %v573 = vand.u32 %v572, 4294901760
    %574 = vmatpush.msra.mxu0 %v573
    %v575 = vand.u32 %v450, 4294901760
    %v576 = vsub.f32 %v450, %v575
    %v577 = vand.u32 %v576, 4294901760
    %v578 = vsub.f32 %v576, %v577
    %v579 = vand.u32 %v578, 4294901760
    %580 = vmatpush.msra.mxu0 %v579
    %v581 = vand.u32 %v449, 4294901760
    %v582 = vsub.f32 %v449, %v581
    %v583 = vand.u32 %v582, 4294901760
    %v584 = vsub.f32 %v582, %v583
    %v585 = vand.u32 %v584, 4294901760
    %586 = vmatpush.msra.mxu0 %v585
    %v587 = vand.u32 %v448, 4294901760
    %v588 = vsub.f32 %v448, %v587
    %v589 = vand.u32 %v588, 4294901760
    %v590 = vsub.f32 %v588, %v589
    %v591 = vand.u32 %v590, 4294901760
    %592 = vmatpush.msra.mxu0 %v591
    %v593 = vand.u32 %v447, 4294901760
    %v594 = vsub.f32 %v447, %v593
    %v595 = vand.u32 %v594, 4294901760
    %v596 = vsub.f32 %v594, %v595
    %v597 = vand.u32 %v596, 4294901760
    %598 = vmatpush.msra.mxu0 %v597
    %v599 = vand.u32 %v446, 4294901760
    %v600 = vsub.f32 %v446, %v599
    %v601 = vand.u32 %v600, 4294901760
    %v602 = vsub.f32 %v600, %v601
    %v603 = vand.u32 %v602, 4294901760
    %604 = vmatpush.msra.mxu0 %v603
    %v605 = vand.u32 %v445, 4294901760
    %v606 = vsub.f32 %v445, %v605
    %v607 = vand.u32 %v606, 4294901760
    %v608 = vsub.f32 %v606, %v607
    %v609 = vand.u32 %v608, 4294901760
    %610 = vmatpush.msra.mxu0 %v609
    %v611 = vand.u32 %v444, 4294901760
    %v612 = vsub.f32 %v444, %v611
    %v613 = vand.u32 %v612, 4294901760
    %v614 = vsub.f32 %v612, %v613
    %v615 = vand.u32 %v614, 4294901760
    %616 = vmatpush.msra.mxu0 %v615
    %v617 = vand.u32 %v442, 4294901760
    %618 = vmatmul.f32.gmra.mxu0 %v617
    %v619 = vpop.f32.mrf.mxu0
    %v620 = vadd.f32 %v519, %v619
    %621 = vdwg.mxu0
    %v622 = vand.u32 %v459, 4294901760
    %v623 = vsub.f32 %v459, %v622
    %624 = vmatpush.msra.mxu0 %v623
    %v625 = vand.u32 %v458, 4294901760
    %v626 = vsub.f32 %v458, %v625
    %627 = vmatpush.msra.mxu0 %v626
    %v628 = vand.u32 %v457, 4294901760
    %v629 = vsub.f32 %v457, %v628
    %630 = vmatpush.msra.mxu0 %v629
    %v631 = vand.u32 %v456, 4294901760
    %v632 = vsub.f32 %v456, %v631
    %633 = vmatpush.msra.mxu0 %v632
    %v634 = vand.u32 %v455, 4294901760
    %v635 = vsub.f32 %v455, %v634
    %636 = vmatpush.msra.mxu0 %v635
    %v637 = vand.u32 %v454, 4294901760
    %v638 = vsub.f32 %v454, %v637
    %639 = vmatpush.msra.mxu0 %v638
    %v640 = vand.u32 %v453, 4294901760
    %v641 = vsub.f32 %v453, %v640
    %642 = vmatpush.msra.mxu0 %v641
    %v643 = vand.u32 %v452, 4294901760
    %v644 = vsub.f32 %v452, %v643
    %645 = vmatpush.msra.mxu0 %v644
    %v646 = vand.u32 %v451, 4294901760
    %v647 = vsub.f32 %v451, %v646
    %648 = vmatpush.msra.mxu0 %v647
    %v649 = vand.u32 %v450, 4294901760
    %v650 = vsub.f32 %v450, %v649
    %651 = vmatpush.msra.mxu0 %v650
    %v652 = vand.u32 %v449, 4294901760
    %v653 = vsub.f32 %v449, %v652
    %654 = vmatpush.msra.mxu0 %v653
    %v655 = vand.u32 %v448, 4294901760
    %v656 = vsub.f32 %v448, %v655
    %657 = vmatpush.msra.mxu0 %v656
    %v658 = vand.u32 %v447, 4294901760
    %v659 = vsub.f32 %v447, %v658
    %660 = vmatpush.msra.mxu0 %v659
    %v661 = vand.u32 %v446, 4294901760
    %v662 = vsub.f32 %v446, %v661
    %663 = vmatpush.msra.mxu0 %v662
    %v664 = vand.u32 %v445, 4294901760
    %v665 = vsub.f32 %v445, %v664
    %666 = vmatpush.msra.mxu0 %v665
    %v667 = vand.u32 %v444, 4294901760
    %v668 = vsub.f32 %v444, %v667
    %669 = vmatpush.msra.mxu0 %v668
    %v670 = vand.u32 %v442, 4294901760
    %v671 = vsub.f32 %v442, %v670
    %672 = vmatmul.f32.gmra.mxu0 %v671
    %v673 = vpop.f32.mrf.mxu0
    %v674 = vadd.f32 %v620, %v673
    %675 = vdwg.mxu0
    %v676 = vand.u32 %v459, 4294901760
    %677 = vmatpush.msra.mxu0 %v676
    %v678 = vand.u32 %v458, 4294901760
    %679 = vmatpush.msra.mxu0 %v678
    %v680 = vand.u32 %v457, 4294901760
    %681 = vmatpush.msra.mxu0 %v680
    %v682 = vand.u32 %v456, 4294901760
    %683 = vmatpush.msra.mxu0 %v682
    %v684 = vand.u32 %v455, 4294901760
    %685 = vmatpush.msra.mxu0 %v684
    %v686 = vand.u32 %v454, 4294901760
    %687 = vmatpush.msra.mxu0 %v686
    %v688 = vand.u32 %v453, 4294901760
    %689 = vmatpush.msra.mxu0 %v688
    %v690 = vand.u32 %v452, 4294901760
    %691 = vmatpush.msra.mxu0 %v690
    %v692 = vand.u32 %v451, 4294901760
    %693 = vmatpush.msra.mxu0 %v692
    %v694 = vand.u32 %v450, 4294901760
    %695 = vmatpush.msra.mxu0 %v694
    %v696 = vand.u32 %v449, 4294901760
    %697 = vmatpush.msra.mxu0 %v696
    %v698 = vand.u32 %v448, 4294901760
    %699 = vmatpush.msra.mxu0 %v698
    %v700 = vand.u32 %v447, 4294901760
    %701 = vmatpush.msra.mxu0 %v700
    %v702 = vand.u32 %v446, 4294901760
    %703 = vmatpush.msra.mxu0 %v702
    %v704 = vand.u32 %v445, 4294901760
    %705 = vmatpush.msra.mxu0 %v704
    %v706 = vand.u32 %v444, 4294901760
    %707 = vmatpush.msra.mxu0 %v706
    %v708 = vand.u32 %v442, 4294901760
    %v709 = vsub.f32 %v442, %v708
    %v710 = vand.u32 %v709, 4294901760
    %711 = vmatmul.f32.gmra.mxu0 %v710
    %v712 = vpop.f32.mrf.mxu0
    %v713 = vadd.f32 %v674, %v712
    %714 = vdwg.mxu0
    %v715 = vand.u32 %v459, 4294901760
    %v716 = vsub.f32 %v459, %v715
    %v717 = vand.u32 %v716, 4294901760
    %718 = vmatpush.msra.mxu0 %v717
    %v719 = vand.u32 %v458, 4294901760
    %v720 = vsub.f32 %v458, %v719
    %v721 = vand.u32 %v720, 4294901760
    %722 = vmatpush.msra.mxu0 %v721
    %v723 = vand.u32 %v457, 4294901760
    %v724 = vsub.f32 %v457, %v723
    %v725 = vand.u32 %v724, 4294901760
    %726 = vmatpush.msra.mxu0 %v725
    %v727 = vand.u32 %v456, 4294901760
    %v728 = vsub.f32 %v456, %v727
    %v729 = vand.u32 %v728, 4294901760
    %730 = vmatpush.msra.mxu0 %v729
    %v731 = vand.u32 %v455, 4294901760
    %v732 = vsub.f32 %v455, %v731
    %v733 = vand.u32 %v732, 4294901760
    %734 = vmatpush.msra.mxu0 %v733
    %v735 = vand.u32 %v454, 4294901760
    %v736 = vsub.f32 %v454, %v735
    %v737 = vand.u32 %v736, 4294901760
    %738 = vmatpush.msra.mxu0 %v737
    %v739 = vand.u32 %v453, 4294901760
    %v740 = vsub.f32 %v453, %v739
    %v741 = vand.u32 %v740, 4294901760
    %742 = vmatpush.msra.mxu0 %v741
    %v743 = vand.u32 %v452, 4294901760
    %v744 = vsub.f32 %v452, %v743
    %v745 = vand.u32 %v744, 4294901760
    %746 = vmatpush.msra.mxu0 %v745
    %v747 = vand.u32 %v451, 4294901760
    %v748 = vsub.f32 %v451, %v747
    %v749 = vand.u32 %v748, 4294901760
    %750 = vmatpush.msra.mxu0 %v749
    %v751 = vand.u32 %v450, 4294901760
    %v752 = vsub.f32 %v450, %v751
    %v753 = vand.u32 %v752, 4294901760
    %754 = vmatpush.msra.mxu0 %v753
    %v755 = vand.u32 %v449, 4294901760
    %v756 = vsub.f32 %v449, %v755
    %v757 = vand.u32 %v756, 4294901760
    %758 = vmatpush.msra.mxu0 %v757
    %v759 = vand.u32 %v448, 4294901760
    %v760 = vsub.f32 %v448, %v759
    %v761 = vand.u32 %v760, 4294901760
    %762 = vmatpush.msra.mxu0 %v761
    %v763 = vand.u32 %v447, 4294901760
    %v764 = vsub.f32 %v447, %v763
    %v765 = vand.u32 %v764, 4294901760
    %766 = vmatpush.msra.mxu0 %v765
    %v767 = vand.u32 %v446, 4294901760
    %v768 = vsub.f32 %v446, %v767
    %v769 = vand.u32 %v768, 4294901760
    %770 = vmatpush.msra.mxu0 %v769
    %v771 = vand.u32 %v445, 4294901760
    %v772 = vsub.f32 %v445, %v771
    %v773 = vand.u32 %v772, 4294901760
    %774 = vmatpush.msra.mxu0 %v773
    %v775 = vand.u32 %v444, 4294901760
    %v776 = vsub.f32 %v444, %v775
    %v777 = vand.u32 %v776, 4294901760
    %778 = vmatpush.msra.mxu0 %v777
    %v779 = vand.u32 %v442, 4294901760
    %780 = vmatmul.f32.gmra.mxu0 %v779
    %v781 = vpop.f32.mrf.mxu0
    %v782 = vadd.f32 %v713, %v781
    %783 = vdwg.mxu0
    %v784 = vand.u32 %v459, 4294901760
    %785 = vmatpush.msra.mxu0 %v784
    %v786 = vand.u32 %v458, 4294901760
    %787 = vmatpush.msra.mxu0 %v786
    %v788 = vand.u32 %v457, 4294901760
    %789 = vmatpush.msra.mxu0 %v788
    %v790 = vand.u32 %v456, 4294901760
    %791 = vmatpush.msra.mxu0 %v790
    %v792 = vand.u32 %v455, 4294901760
    %793 = vmatpush.msra.mxu0 %v792
    %v794 = vand.u32 %v454, 4294901760
    %795 = vmatpush.msra.mxu0 %v794
    %v796 = vand.u32 %v453, 4294901760
    %797 = vmatpush.msra.mxu0 %v796
    %v798 = vand.u32 %v452, 4294901760
    %799 = vmatpush.msra.mxu0 %v798
    %v800 = vand.u32 %v451, 4294901760
    %801 = vmatpush.msra.mxu0 %v800
    %v802 = vand.u32 %v450, 4294901760
    %803 = vmatpush.msra.mxu0 %v802
    %v804 = vand.u32 %v449, 4294901760
    %805 = vmatpush.msra.mxu0 %v804
    %v806 = vand.u32 %v448, 4294901760
    %807 = vmatpush.msra.mxu0 %v806
    %v808 = vand.u32 %v447, 4294901760
    %809 = vmatpush.msra.mxu0 %v808
    %v810 = vand.u32 %v446, 4294901760
    %811 = vmatpush.msra.mxu0 %v810
    %v812 = vand.u32 %v445, 4294901760
    %813 = vmatpush.msra.mxu0 %v812
    %v814 = vand.u32 %v444, 4294901760
    %815 = vmatpush.msra.mxu0 %v814
    %v816 = vand.u32 %v442, 4294901760
    %817 = vmatmul.f32.gmra.mxu0 %v816
    %v818 = vpop.f32.mrf.mxu0
    %v819 = vadd.f32 %v782, %v818
    %820 = vdwg.mxu0
    %v821 = vand.u32 %v475, 4294901760
    %822 = vmatpush.msra.mxu0 %v821
    %v823 = vand.u32 %v474, 4294901760
    %824 = vmatpush.msra.mxu0 %v823
    %v825 = vand.u32 %v473, 4294901760
    %826 = vmatpush.msra.mxu0 %v825
    %v827 = vand.u32 %v472, 4294901760
    %828 = vmatpush.msra.mxu0 %v827
    %v829 = vand.u32 %v471, 4294901760
    %830 = vmatpush.msra.mxu0 %v829
    %v831 = vand.u32 %v470, 4294901760
    %832 = vmatpush.msra.mxu0 %v831
    %v833 = vand.u32 %v469, 4294901760
    %834 = vmatpush.msra.mxu0 %v833
    %v835 = vand.u32 %v468, 4294901760
    %836 = vmatpush.msra.mxu0 %v835
    %v837 = vand.u32 %v467, 4294901760
    %838 = vmatpush.msra.mxu0 %v837
    %v839 = vand.u32 %v466, 4294901760
    %840 = vmatpush.msra.mxu0 %v839
    %v841 = vand.u32 %v465, 4294901760
    %842 = vmatpush.msra.mxu0 %v841
    %v843 = vand.u32 %v464, 4294901760
    %844 = vmatpush.msra.mxu0 %v843
    %v845 = vand.u32 %v463, 4294901760
    %846 = vmatpush.msra.mxu0 %v845
    %v847 = vand.u32 %v462, 4294901760
    %848 = vmatpush.msra.mxu0 %v847
    %v849 = vand.u32 %v461, 4294901760
    %850 = vmatpush.msra.mxu0 %v849
    %v851 = vand.u32 %v460, 4294901760
    %852 = vmatpush.msra.mxu0 %v851
    %v853 = vand.u32 %v443, 4294901760
    %v854 = vsub.f32 %v443, %v853
    %v855 = vand.u32 %v854, 4294901760
    %v856 = vsub.f32 %v854, %v855
    %v857 = vand.u32 %v856, 4294901760
    %858 = vmatmul.f32.gmra.mxu0 %v857
    %v859 = vpop.f32.mrf.mxu0
    %v860 = vadd.f32 %v819, %v859
    %861 = vdwg.mxu0
    %v862 = vand.u32 %v475, 4294901760
    %v863 = vsub.f32 %v475, %v862
    %v864 = vand.u32 %v863, 4294901760
    %v865 = vsub.f32 %v863, %v864
    %v866 = vand.u32 %v865, 4294901760
    %867 = vmatpush.msra.mxu0 %v866
    %v868 = vand.u32 %v474, 4294901760
    %v869 = vsub.f32 %v474, %v868
    %v870 = vand.u32 %v869, 4294901760
    %v871 = vsub.f32 %v869, %v870
    %v872 = vand.u32 %v871, 4294901760
    %873 = vmatpush.msra.mxu0 %v872
    %v874 = vand.u32 %v473, 4294901760
    %v875 = vsub.f32 %v473, %v874
    %v876 = vand.u32 %v875, 4294901760
    %v877 = vsub.f32 %v875, %v876
    %v878 = vand.u32 %v877, 4294901760
    %879 = vmatpush.msra.mxu0 %v878
    %v880 = vand.u32 %v472, 4294901760
    %v881 = vsub.f32 %v472, %v880
    %v882 = vand.u32 %v881, 4294901760
    %v883 = vsub.f32 %v881, %v882
    %v884 = vand.u32 %v883, 4294901760
    %885 = vmatpush.msra.mxu0 %v884
    %v886 = vand.u32 %v471, 4294901760
    %v887 = vsub.f32 %v471, %v886
    %v888 = vand.u32 %v887, 4294901760
    %v889 = vsub.f32 %v887, %v888
    %v890 = vand.u32 %v889, 4294901760
    %891 = vmatpush.msra.mxu0 %v890
    %v892 = vand.u32 %v470, 4294901760
    %v893 = vsub.f32 %v470, %v892
    %v894 = vand.u32 %v893, 4294901760
    %v895 = vsub.f32 %v893, %v894
    %v896 = vand.u32 %v895, 4294901760
    %897 = vmatpush.msra.mxu0 %v896
    %v898 = vand.u32 %v469, 4294901760
    %v899 = vsub.f32 %v469, %v898
    %v900 = vand.u32 %v899, 4294901760
    %v901 = vsub.f32 %v899, %v900
    %v902 = vand.u32 %v901, 4294901760
    %903 = vmatpush.msra.mxu0 %v902
    %v904 = vand.u32 %v468, 4294901760
    %v905 = vsub.f32 %v468, %v904
    %v906 = vand.u32 %v905, 4294901760
    %v907 = vsub.f32 %v905, %v906
    %v908 = vand.u32 %v907, 4294901760
    %909 = vmatpush.msra.mxu0 %v908
    %v910 = vand.u32 %v467, 4294901760
    %v911 = vsub.f32 %v467, %v910
    %v912 = vand.u32 %v911, 4294901760
    %v913 = vsub.f32 %v911, %v912
    %v914 = vand.u32 %v913, 4294901760
    %915 = vmatpush.msra.mxu0 %v914
    %v916 = vand.u32 %v466, 4294901760
    %v917 = vsub.f32 %v466, %v916
    %v918 = vand.u32 %v917, 4294901760
    %v919 = vsub.f32 %v917, %v918
    %v920 = vand.u32 %v919, 4294901760
    %921 = vmatpush.msra.mxu0 %v920
    %v922 = vand.u32 %v465, 4294901760
    %v923 = vsub.f32 %v465, %v922
    %v924 = vand.u32 %v923, 4294901760
    %v925 = vsub.f32 %v923, %v924
    %v926 = vand.u32 %v925, 4294901760
    %927 = vmatpush.msra.mxu0 %v926
    %v928 = vand.u32 %v464, 4294901760
    %v929 = vsub.f32 %v464, %v928
    %v930 = vand.u32 %v929, 4294901760
    %v931 = vsub.f32 %v929, %v930
    %v932 = vand.u32 %v931, 4294901760
    %933 = vmatpush.msra.mxu0 %v932
    %v934 = vand.u32 %v463, 4294901760
    %v935 = vsub.f32 %v463, %v934
    %v936 = vand.u32 %v935, 4294901760
    %v937 = vsub.f32 %v935, %v936
    %v938 = vand.u32 %v937, 4294901760
    %939 = vmatpush.msra.mxu0 %v938
    %v940 = vand.u32 %v462, 4294901760
    %v941 = vsub.f32 %v462, %v940
    %v942 = vand.u32 %v941, 4294901760
    %v943 = vsub.f32 %v941, %v942
    %v944 = vand.u32 %v943, 4294901760
    %945 = vmatpush.msra.mxu0 %v944
    %v946 = vand.u32 %v461, 4294901760
    %v947 = vsub.f32 %v461, %v946
    %v948 = vand.u32 %v947, 4294901760
    %v949 = vsub.f32 %v947, %v948
    %v950 = vand.u32 %v949, 4294901760
    %951 = vmatpush.msra.mxu0 %v950
    %v952 = vand.u32 %v460, 4294901760
    %v953 = vsub.f32 %v460, %v952
    %v954 = vand.u32 %v953, 4294901760
    %v955 = vsub.f32 %v953, %v954
    %v956 = vand.u32 %v955, 4294901760
    %957 = vmatpush.msra.mxu0 %v956
    %v958 = vand.u32 %v443, 4294901760
    %959 = vmatmul.f32.gmra.mxu0 %v958
    %v960 = vpop.f32.mrf.mxu0
    %v961 = vadd.f32 %v860, %v960
    %962 = vdwg.mxu0
    %v963 = vand.u32 %v475, 4294901760
    %v964 = vsub.f32 %v475, %v963
    %965 = vmatpush.msra.mxu0 %v964
    %v966 = vand.u32 %v474, 4294901760
    %v967 = vsub.f32 %v474, %v966
    %968 = vmatpush.msra.mxu0 %v967
    %v969 = vand.u32 %v473, 4294901760
    %v970 = vsub.f32 %v473, %v969
    %971 = vmatpush.msra.mxu0 %v970
    %v972 = vand.u32 %v472, 4294901760
    %v973 = vsub.f32 %v472, %v972
    %974 = vmatpush.msra.mxu0 %v973
    %v975 = vand.u32 %v471, 4294901760
    %v976 = vsub.f32 %v471, %v975
    %977 = vmatpush.msra.mxu0 %v976
    %v978 = vand.u32 %v470, 4294901760
    %v979 = vsub.f32 %v470, %v978
    %980 = vmatpush.msra.mxu0 %v979
    %v981 = vand.u32 %v469, 4294901760
    %v982 = vsub.f32 %v469, %v981
    %983 = vmatpush.msra.mxu0 %v982
    %v984 = vand.u32 %v468, 4294901760
    %v985 = vsub.f32 %v468, %v984
    %986 = vmatpush.msra.mxu0 %v985
    %v987 = vand.u32 %v467, 4294901760
    %v988 = vsub.f32 %v467, %v987
    %989 = vmatpush.msra.mxu0 %v988
    %v990 = vand.u32 %v466, 4294901760
    %v991 = vsub.f32 %v466, %v990
    %992 = vmatpush.msra.mxu0 %v991
    %v993 = vand.u32 %v465, 4294901760
    %v994 = vsub.f32 %v465, %v993
    %995 = vmatpush.msra.mxu0 %v994
    %v996 = vand.u32 %v464, 4294901760
    %v997 = vsub.f32 %v464, %v996
    %998 = vmatpush.msra.mxu0 %v997
    %v999 = vand.u32 %v463, 4294901760
    %v1000 = vsub.f32 %v463, %v999
    %1001 = vmatpush.msra.mxu0 %v1000
    %v1002 = vand.u32 %v462, 4294901760
    %v1003 = vsub.f32 %v462, %v1002
    %1004 = vmatpush.msra.mxu0 %v1003
    %v1005 = vand.u32 %v461, 4294901760
    %v1006 = vsub.f32 %v461, %v1005
    %1007 = vmatpush.msra.mxu0 %v1006
    %v1008 = vand.u32 %v460, 4294901760
    %v1009 = vsub.f32 %v460, %v1008
    %1010 = vmatpush.msra.mxu0 %v1009
    %v1011 = vand.u32 %v443, 4294901760
    %v1012 = vsub.f32 %v443, %v1011
    %1013 = vmatmul.f32.gmra.mxu0 %v1012
    %v1014 = vpop.f32.mrf.mxu0
    %v1015 = vadd.f32 %v961, %v1014
    %1016 = vdwg.mxu0
    %v1017 = vand.u32 %v475, 4294901760
    %1018 = vmatpush.msra.mxu0 %v1017
    %v1019 = vand.u32 %v474, 4294901760
    %1020 = vmatpush.msra.mxu0 %v1019
    %v1021 = vand.u32 %v473, 4294901760
    %1022 = vmatpush.msra.mxu0 %v1021
    %v1023 = vand.u32 %v472, 4294901760
    %1024 = vmatpush.msra.mxu0 %v1023
    %v1025 = vand.u32 %v471, 4294901760
    %1026 = vmatpush.msra.mxu0 %v1025
    %v1027 = vand.u32 %v470, 4294901760
    %1028 = vmatpush.msra.mxu0 %v1027
    %v1029 = vand.u32 %v469, 4294901760
    %1030 = vmatpush.msra.mxu0 %v1029
    %v1031 = vand.u32 %v468, 4294901760
    %1032 = vmatpush.msra.mxu0 %v1031
    %v1033 = vand.u32 %v467, 4294901760
    %1034 = vmatpush.msra.mxu0 %v1033
    %v1035 = vand.u32 %v466, 4294901760
    %1036 = vmatpush.msra.mxu0 %v1035
    %v1037 = vand.u32 %v465, 4294901760
    %1038 = vmatpush.msra.mxu0 %v1037
    %v1039 = vand.u32 %v464, 4294901760
    %1040 = vmatpush.msra.mxu0 %v1039
    %v1041 = vand.u32 %v463, 4294901760
    %1042 = vmatpush.msra.mxu0 %v1041
    %v1043 = vand.u32 %v462, 4294901760
    %1044 = vmatpush.msra.mxu0 %v1043
    %v1045 = vand.u32 %v461, 4294901760
    %1046 = vmatpush.msra.mxu0 %v1045
    %v1047 = vand.u32 %v460, 4294901760
    %1048 = vmatpush.msra.mxu0 %v1047
    %v1049 = vand.u32 %v443, 4294901760
    %v1050 = vsub.f32 %v443, %v1049
    %v1051 = vand.u32 %v1050, 4294901760
    %1052 = vmatmul.f32.gmra.mxu0 %v1051
    %v1053 = vpop.f32.mrf.mxu0
    %v1054 = vadd.f32 %v1015, %v1053
    %1055 = vdwg.mxu0
    %v1056 = vand.u32 %v475, 4294901760
    %v1057 = vsub.f32 %v475, %v1056
    %v1058 = vand.u32 %v1057, 4294901760
    %1059 = vmatpush.msra.mxu0 %v1058
    %v1060 = vand.u32 %v474, 4294901760
    %v1061 = vsub.f32 %v474, %v1060
    %v1062 = vand.u32 %v1061, 4294901760
    %1063 = vmatpush.msra.mxu0 %v1062
    %v1064 = vand.u32 %v473, 4294901760
    %v1065 = vsub.f32 %v473, %v1064
    %v1066 = vand.u32 %v1065, 4294901760
    %1067 = vmatpush.msra.mxu0 %v1066
    %v1068 = vand.u32 %v472, 4294901760
    %v1069 = vsub.f32 %v472, %v1068
    %v1070 = vand.u32 %v1069, 4294901760
    %1071 = vmatpush.msra.mxu0 %v1070
    %v1072 = vand.u32 %v471, 4294901760
    %v1073 = vsub.f32 %v471, %v1072
    %v1074 = vand.u32 %v1073, 4294901760
    %1075 = vmatpush.msra.mxu0 %v1074
    %v1076 = vand.u32 %v470, 4294901760
    %v1077 = vsub.f32 %v470, %v1076
    %v1078 = vand.u32 %v1077, 4294901760
    %1079 = vmatpush.msra.mxu0 %v1078
    %v1080 = vand.u32 %v469, 4294901760
    %v1081 = vsub.f32 %v469, %v1080
    %v1082 = vand.u32 %v1081, 4294901760
    %1083 = vmatpush.msra.mxu0 %v1082
    %v1084 = vand.u32 %v468, 4294901760
    %v1085 = vsub.f32 %v468, %v1084
    %v1086 = vand.u32 %v1085, 4294901760
    %1087 = vmatpush.msra.mxu0 %v1086
    %v1088 = vand.u32 %v467, 4294901760
    %v1089 = vsub.f32 %v467, %v1088
    %v1090 = vand.u32 %v1089, 4294901760
    %1091 = vmatpush.msra.mxu0 %v1090
    %v1092 = vand.u32 %v466, 4294901760
    %v1093 = vsub.f32 %v466, %v1092
    %v1094 = vand.u32 %v1093, 4294901760
    %1095 = vmatpush.msra.mxu0 %v1094
    %v1096 = vand.u32 %v465, 4294901760
    %v1097 = vsub.f32 %v465, %v1096
    %v1098 = vand.u32 %v1097, 4294901760
    %1099 = vmatpush.msra.mxu0 %v1098
    %v1100 = vand.u32 %v464, 4294901760
    %v1101 = vsub.f32 %v464, %v1100
    %v1102 = vand.u32 %v1101, 4294901760
    %1103 = vmatpush.msra.mxu0 %v1102
    %v1104 = vand.u32 %v463, 4294901760
    %v1105 = vsub.f32 %v463, %v1104
    %v1106 = vand.u32 %v1105, 4294901760
    %1107 = vmatpush.msra.mxu0 %v1106
    %v1108 = vand.u32 %v462, 4294901760
    %v1109 = vsub.f32 %v462, %v1108
    %v1110 = vand.u32 %v1109, 4294901760
    %1111 = vmatpush.msra.mxu0 %v1110
    %v1112 = vand.u32 %v461, 4294901760
    %v1113 = vsub.f32 %v461, %v1112
    %v1114 = vand.u32 %v1113, 4294901760
    %1115 = vmatpush.msra.mxu0 %v1114
    %v1116 = vand.u32 %v460, 4294901760
    %v1117 = vsub.f32 %v460, %v1116
    %v1118 = vand.u32 %v1117, 4294901760
    %1119 = vmatpush.msra.mxu0 %v1118
    %v1120 = vand.u32 %v443, 4294901760
    %1121 = vmatmul.f32.gmra.mxu0 %v1120
    %v1122 = vpop.f32.mrf.mxu0
    %v1123 = vadd.f32 %v1054, %v1122
    %1124 = vdwg.mxu0
    %v1125 = vand.u32 %v475, 4294901760
    %1126 = vmatpush.msra.mxu0 %v1125
    %v1127 = vand.u32 %v474, 4294901760
    %1128 = vmatpush.msra.mxu0 %v1127
    %v1129 = vand.u32 %v473, 4294901760
    %1130 = vmatpush.msra.mxu0 %v1129
    %v1131 = vand.u32 %v472, 4294901760
    %1132 = vmatpush.msra.mxu0 %v1131
    %v1133 = vand.u32 %v471, 4294901760
    %1134 = vmatpush.msra.mxu0 %v1133
    %v1135 = vand.u32 %v470, 4294901760
    %1136 = vmatpush.msra.mxu0 %v1135
    %v1137 = vand.u32 %v469, 4294901760
    %1138 = vmatpush.msra.mxu0 %v1137
    %v1139 = vand.u32 %v468, 4294901760
    %1140 = vmatpush.msra.mxu0 %v1139
    %v1141 = vand.u32 %v467, 4294901760
    %1142 = vmatpush.msra.mxu0 %v1141
    %v1143 = vand.u32 %v466, 4294901760
    %1144 = vmatpush.msra.mxu0 %v1143
    %v1145 = vand.u32 %v465, 4294901760
    %1146 = vmatpush.msra.mxu0 %v1145
    %v1147 = vand.u32 %v464, 4294901760
    %1148 = vmatpush.msra.mxu0 %v1147
    %v1149 = vand.u32 %v463, 4294901760
    %1150 = vmatpush.msra.mxu0 %v1149
    %v1151 = vand.u32 %v462, 4294901760
    %1152 = vmatpush.msra.mxu0 %v1151
    %v1153 = vand.u32 %v461, 4294901760
    %1154 = vmatpush.msra.mxu0 %v1153
    %v1155 = vand.u32 %v460, 4294901760
    %1156 = vmatpush.msra.mxu0 %v1155
    %v1157 = vand.u32 %v443, 4294901760
    %1158 = vmatmul.f32.gmra.mxu0 %v1157
    %v1159 = vpop.f32.mrf.mxu0
    %v1160 = vadd.f32 %v1123, %v1159
    %1161 = vdwg.mxu0
    %vm1162 = vcmp.gt.f32.partialorder %v1160, 0.0
    %v1163 = vmin.f32 %v1160, 0.0
    %v1164 = vmul.f32 %v1163, 1.442695
    %v1165 = vpow.pop %v1164
    %v1166 = vsub.f32 %v1165, 1.0
    %v1167 = vsel %vm1162, %v1160, %v1166
    %v1168 = vld [vmem:[%s5] sm:$0xff]
    %v1169 = vld [vmem:[%s5 + $0x8] sm:$0xff]
    %v1170 = vld [vmem:[%s5 + $0x10] sm:$0xff]
    %v1171 = vld [vmem:[%s5 + $0x18] sm:$0xff]
    %v1172 = vld [vmem:[%s5 + $0x20] sm:$0xff]
    %v1173 = vld [vmem:[%s5 + $0x28] sm:$0xff]
    %v1174 = vld [vmem:[%s5 + $0x30] sm:$0xff]
    %v1175 = vld [vmem:[%s5 + $0x38] sm:$0xff]
    %v1176 = vld [vmem:[%s5 + $0x40] sm:$0xff]
    %v1177 = vld [vmem:[%s5 + $0x48] sm:$0xff]
    %v1178 = vld [vmem:[%s5 + $0x50] sm:$0xff]
    %v1179 = vld [vmem:[%s5 + $0x58] sm:$0xff]
    %v1180 = vld [vmem:[%s5 + $0x60] sm:$0xff]
    %v1181 = vld [vmem:[%s5 + $0x68] sm:$0xff]
    %v1182 = vld [vmem:[%s5 + $0x70] sm:$0xff]
    %v1183 = vld [vmem:[%s5 + $0x78] sm:$0xff]
    %v1184 = vld [vmem:[%s6] sm:$0x1]
    %v1186 = vperm.slane %v1184, 0
    %v1188 = vand.u32 %v1183, 4294901760
    %1189 = vmatpush.msra.mxu0 %v1188
    %v1190 = vand.u32 %v1182, 4294901760
    %1191 = vmatpush.msra.mxu0 %v1190
    %v1192 = vand.u32 %v1181, 4294901760
    %1193 = vmatpush.msra.mxu0 %v1192
    %v1194 = vand.u32 %v1180, 4294901760
    %1195 = vmatpush.msra.mxu0 %v1194
    %v1196 = vand.u32 %v1179, 4294901760
    %1197 = vmatpush.msra.mxu0 %v1196
    %v1198 = vand.u32 %v1178, 4294901760
    %1199 = vmatpush.msra.mxu0 %v1198
    %v1200 = vand.u32 %v1177, 4294901760
    %1201 = vmatpush.msra.mxu0 %v1200
    %v1202 = vand.u32 %v1176, 4294901760
    %1203 = vmatpush.msra.mxu0 %v1202
    %v1204 = vand.u32 %v1175, 4294901760
    %1205 = vmatpush.msra.mxu0 %v1204
    %v1206 = vand.u32 %v1174, 4294901760
    %1207 = vmatpush.msra.mxu0 %v1206
    %v1208 = vand.u32 %v1173, 4294901760
    %1209 = vmatpush.msra.mxu0 %v1208
    %v1210 = vand.u32 %v1172, 4294901760
    %1211 = vmatpush.msra.mxu0 %v1210
    %v1212 = vand.u32 %v1171, 4294901760
    %1213 = vmatpush.msra.mxu0 %v1212
    %v1214 = vand.u32 %v1170, 4294901760
    %1215 = vmatpush.msra.mxu0 %v1214
    %v1216 = vand.u32 %v1169, 4294901760
    %1217 = vmatpush.msra.mxu0 %v1216
    %v1218 = vand.u32 %v1168, 4294901760
    %1219 = vmatpush.msra.mxu0 %v1218
    %v1220 = vand.u32 %v1167, 4294901760
    %v1221 = vsub.f32 %v1167, %v1220
    %v1222 = vand.u32 %v1221, 4294901760
    %v1223 = vsub.f32 %v1221, %v1222
    %v1224 = vand.u32 %v1223, 4294901760
    %1225 = vmatmul.f32.gmra.mxu0 %v1224
    %v1226 = vpop.f32.mrf.mxu0
    %v1227 = vadd.f32 %v1186, %v1226
    %1228 = vdwg.mxu0
    %v1229 = vand.u32 %v1183, 4294901760
    %v1230 = vsub.f32 %v1183, %v1229
    %v1231 = vand.u32 %v1230, 4294901760
    %v1232 = vsub.f32 %v1230, %v1231
    %v1233 = vand.u32 %v1232, 4294901760
    %1234 = vmatpush.msra.mxu0 %v1233
    %v1235 = vand.u32 %v1182, 4294901760
    %v1236 = vsub.f32 %v1182, %v1235
    %v1237 = vand.u32 %v1236, 4294901760
    %v1238 = vsub.f32 %v1236, %v1237
    %v1239 = vand.u32 %v1238, 4294901760
    %1240 = vmatpush.msra.mxu0 %v1239
    %v1241 = vand.u32 %v1181, 4294901760
    %v1242 = vsub.f32 %v1181, %v1241
    %v1243 = vand.u32 %v1242, 4294901760
    %v1244 = vsub.f32 %v1242, %v1243
    %v1245 = vand.u32 %v1244, 4294901760
    %1246 = vmatpush.msra.mxu0 %v1245
    %v1247 = vand.u32 %v1180, 4294901760
    %v1248 = vsub.f32 %v1180, %v1247
    %v1249 = vand.u32 %v1248, 4294901760
    %v1250 = vsub.f32 %v1248, %v1249
    %v1251 = vand.u32 %v1250, 4294901760
    %1252 = vmatpush.msra.mxu0 %v1251
    %v1253 = vand.u32 %v1179, 4294901760
    %v1254 = vsub.f32 %v1179, %v1253
    %v1255 = vand.u32 %v1254, 4294901760
    %v1256 = vsub.f32 %v1254, %v1255
    %v1257 = vand.u32 %v1256, 4294901760
    %1258 = vmatpush.msra.mxu0 %v1257
    %v1259 = vand.u32 %v1178, 4294901760
    %v1260 = vsub.f32 %v1178, %v1259
    %v1261 = vand.u32 %v1260, 4294901760
    %v1262 = vsub.f32 %v1260, %v1261
    %v1263 = vand.u32 %v1262, 4294901760
    %1264 = vmatpush.msra.mxu0 %v1263
    %v1265 = vand.u32 %v1177, 4294901760
    %v1266 = vsub.f32 %v1177, %v1265
    %v1267 = vand.u32 %v1266, 4294901760
    %v1268 = vsub.f32 %v1266, %v1267
    %v1269 = vand.u32 %v1268, 4294901760
    %1270 = vmatpush.msra.mxu0 %v1269
    %v1271 = vand.u32 %v1176, 4294901760
    %v1272 = vsub.f32 %v1176, %v1271
    %v1273 = vand.u32 %v1272, 4294901760
    %v1274 = vsub.f32 %v1272, %v1273
    %v1275 = vand.u32 %v1274, 4294901760
    %1276 = vmatpush.msra.mxu0 %v1275
    %v1277 = vand.u32 %v1175, 4294901760
    %v1278 = vsub.f32 %v1175, %v1277
    %v1279 = vand.u32 %v1278, 4294901760
    %v1280 = vsub.f32 %v1278, %v1279
    %v1281 = vand.u32 %v1280, 4294901760
    %1282 = vmatpush.msra.mxu0 %v1281
    %v1283 = vand.u32 %v1174, 4294901760
    %v1284 = vsub.f32 %v1174, %v1283
    %v1285 = vand.u32 %v1284, 4294901760
    %v1286 = vsub.f32 %v1284, %v1285
    %v1287 = vand.u32 %v1286, 4294901760
    %1288 = vmatpush.msra.mxu0 %v1287
    %v1289 = vand.u32 %v1173, 4294901760
    %v1290 = vsub.f32 %v1173, %v1289
    %v1291 = vand.u32 %v1290, 4294901760
    %v1292 = vsub.f32 %v1290, %v1291
    %v1293 = vand.u32 %v1292, 4294901760
    %1294 = vmatpush.msra.mxu0 %v1293
    %v1295 = vand.u32 %v1172, 4294901760
    %v1296 = vsub.f32 %v1172, %v1295
    %v1297 = vand.u32 %v1296, 4294901760
    %v1298 = vsub.f32 %v1296, %v1297
    %v1299 = vand.u32 %v1298, 4294901760
    %1300 = vmatpush.msra.mxu0 %v1299
    %v1301 = vand.u32 %v1171, 4294901760
    %v1302 = vsub.f32 %v1171, %v1301
    %v1303 = vand.u32 %v1302, 4294901760
    %v1304 = vsub.f32 %v1302, %v1303
    %v1305 = vand.u32 %v1304, 4294901760
    %1306 = vmatpush.msra.mxu0 %v1305
    %v1307 = vand.u32 %v1170, 4294901760
    %v1308 = vsub.f32 %v1170, %v1307
    %v1309 = vand.u32 %v1308, 4294901760
    %v1310 = vsub.f32 %v1308, %v1309
    %v1311 = vand.u32 %v1310, 4294901760
    %1312 = vmatpush.msra.mxu0 %v1311
    %v1313 = vand.u32 %v1169, 4294901760
    %v1314 = vsub.f32 %v1169, %v1313
    %v1315 = vand.u32 %v1314, 4294901760
    %v1316 = vsub.f32 %v1314, %v1315
    %v1317 = vand.u32 %v1316, 4294901760
    %1318 = vmatpush.msra.mxu0 %v1317
    %v1319 = vand.u32 %v1168, 4294901760
    %v1320 = vsub.f32 %v1168, %v1319
    %v1321 = vand.u32 %v1320, 4294901760
    %v1322 = vsub.f32 %v1320, %v1321
    %v1323 = vand.u32 %v1322, 4294901760
    %1324 = vmatpush.msra.mxu0 %v1323
    %v1325 = vand.u32 %v1167, 4294901760
    %1326 = vmatmul.f32.gmra.mxu0 %v1325
    %v1327 = vpop.f32.mrf.mxu0
    %v1328 = vadd.f32 %v1227, %v1327
    %1329 = vdwg.mxu0
    %v1330 = vand.u32 %v1183, 4294901760
    %v1331 = vsub.f32 %v1183, %v1330
    %1332 = vmatpush.msra.mxu0 %v1331
    %v1333 = vand.u32 %v1182, 4294901760
    %v1334 = vsub.f32 %v1182, %v1333
    %1335 = vmatpush.msra.mxu0 %v1334
    %v1336 = vand.u32 %v1181, 4294901760
    %v1337 = vsub.f32 %v1181, %v1336
    %1338 = vmatpush.msra.mxu0 %v1337
    %v1339 = vand.u32 %v1180, 4294901760
    %v1340 = vsub.f32 %v1180, %v1339
    %1341 = vmatpush.msra.mxu0 %v1340
    %v1342 = vand.u32 %v1179, 4294901760
    %v1343 = vsub.f32 %v1179, %v1342
    %1344 = vmatpush.msra.mxu0 %v1343
    %v1345 = vand.u32 %v1178, 4294901760
    %v1346 = vsub.f32 %v1178, %v1345
    %1347 = vmatpush.msra.mxu0 %v1346
    %v1348 = vand.u32 %v1177, 4294901760
    %v1349 = vsub.f32 %v1177, %v1348
    %1350 = vmatpush.msra.mxu0 %v1349
    %v1351 = vand.u32 %v1176, 4294901760
    %v1352 = vsub.f32 %v1176, %v1351
    %1353 = vmatpush.msra.mxu0 %v1352
    %v1354 = vand.u32 %v1175, 4294901760
    %v1355 = vsub.f32 %v1175, %v1354
    %1356 = vmatpush.msra.mxu0 %v1355
    %v1357 = vand.u32 %v1174, 4294901760
    %v1358 = vsub.f32 %v1174, %v1357
    %1359 = vmatpush.msra.mxu0 %v1358
    %v1360 = vand.u32 %v1173, 4294901760
    %v1361 = vsub.f32 %v1173, %v1360
    %1362 = vmatpush.msra.mxu0 %v1361
    %v1363 = vand.u32 %v1172, 4294901760
    %v1364 = vsub.f32 %v1172, %v1363
    %1365 = vmatpush.msra.mxu0 %v1364
    %v1366 = vand.u32 %v1171, 4294901760
    %v1367 = vsub.f32 %v1171, %v1366
    %1368 = vmatpush.msra.mxu0 %v1367
    %v1369 = vand.u32 %v1170, 4294901760
    %v1370 = vsub.f32 %v1170, %v1369
    %1371 = vmatpush.msra.mxu0 %v1370
    %v1372 = vand.u32 %v1169, 4294901760
    %v1373 = vsub.f32 %v1169, %v1372
    %1374 = vmatpush.msra.mxu0 %v1373
    %v1375 = vand.u32 %v1168, 4294901760
    %v1376 = vsub.f32 %v1168, %v1375
    %1377 = vmatpush.msra.mxu0 %v1376
    %v1378 = vand.u32 %v1167, 4294901760
    %v1379 = vsub.f32 %v1167, %v1378
    %1380 = vmatmul.f32.gmra.mxu0 %v1379
    %v1381 = vpop.f32.mrf.mxu0
    %v1382 = vadd.f32 %v1328, %v1381
    %1383 = vdwg.mxu0
    %v1384 = vand.u32 %v1183, 4294901760
    %1385 = vmatpush.msra.mxu0 %v1384
    %v1386 = vand.u32 %v1182, 4294901760
    %1387 = vmatpush.msra.mxu0 %v1386
    %v1388 = vand.u32 %v1181, 4294901760
    %1389 = vmatpush.msra.mxu0 %v1388
    %v1390 = vand.u32 %v1180, 4294901760
    %1391 = vmatpush.msra.mxu0 %v1390
    %v1392 = vand.u32 %v1179, 4294901760
    %1393 = vmatpush.msra.mxu0 %v1392
    %v1394 = vand.u32 %v1178, 4294901760
    %1395 = vmatpush.msra.mxu0 %v1394
    %v1396 = vand.u32 %v1177, 4294901760
    %1397 = vmatpush.msra.mxu0 %v1396
    %v1398 = vand.u32 %v1176, 4294901760
    %1399 = vmatpush.msra.mxu0 %v1398
    %v1400 = vand.u32 %v1175, 4294901760
    %1401 = vmatpush.msra.mxu0 %v1400
    %v1402 = vand.u32 %v1174, 4294901760
    %1403 = vmatpush.msra.mxu0 %v1402
    %v1404 = vand.u32 %v1173, 4294901760
    %1405 = vmatpush.msra.mxu0 %v1404
    %v1406 = vand.u32 %v1172, 4294901760
    %1407 = vmatpush.msra.mxu0 %v1406
    %v1408 = vand.u32 %v1171, 4294901760
    %1409 = vmatpush.msra.mxu0 %v1408
    %v1410 = vand.u32 %v1170, 4294901760
    %1411 = vmatpush.msra.mxu0 %v1410
    %v1412 = vand.u32 %v1169, 4294901760
    %1413 = vmatpush.msra.mxu0 %v1412
    %v1414 = vand.u32 %v1168, 4294901760
    %1415 = vmatpush.msra.mxu0 %v1414
    %v1416 = vand.u32 %v1167, 4294901760
    %v1417 = vsub.f32 %v1167, %v1416
    %v1418 = vand.u32 %v1417, 4294901760
    %1419 = vmatmul.f32.gmra.mxu0 %v1418
    %v1420 = vpop.f32.mrf.mxu0
    %v1421 = vadd.f32 %v1382, %v1420
    %1422 = vdwg.mxu0
    %v1423 = vand.u32 %v1183, 4294901760
    %v1424 = vsub.f32 %v1183, %v1423
    %v1425 = vand.u32 %v1424, 4294901760
    %1426 = vmatpush.msra.mxu0 %v1425
    %v1427 = vand.u32 %v1182, 4294901760
    %v1428 = vsub.f32 %v1182, %v1427
    %v1429 = vand.u32 %v1428, 4294901760
    %1430 = vmatpush.msra.mxu0 %v1429
    %v1431 = vand.u32 %v1181, 4294901760
    %v1432 = vsub.f32 %v1181, %v1431
    %v1433 = vand.u32 %v1432, 4294901760
    %1434 = vmatpush.msra.mxu0 %v1433
    %v1435 = vand.u32 %v1180, 4294901760
    %v1436 = vsub.f32 %v1180, %v1435
    %v1437 = vand.u32 %v1436, 4294901760
    %1438 = vmatpush.msra.mxu0 %v1437
    %v1439 = vand.u32 %v1179, 4294901760
    %v1440 = vsub.f32 %v1179, %v1439
    %v1441 = vand.u32 %v1440, 4294901760
    %1442 = vmatpush.msra.mxu0 %v1441
    %v1443 = vand.u32 %v1178, 4294901760
    %v1444 = vsub.f32 %v1178, %v1443
    %v1445 = vand.u32 %v1444, 4294901760
    %1446 = vmatpush.msra.mxu0 %v1445
    %v1447 = vand.u32 %v1177, 4294901760
    %v1448 = vsub.f32 %v1177, %v1447
    %v1449 = vand.u32 %v1448, 4294901760
    %1450 = vmatpush.msra.mxu0 %v1449
    %v1451 = vand.u32 %v1176, 4294901760
    %v1452 = vsub.f32 %v1176, %v1451
    %v1453 = vand.u32 %v1452, 4294901760
    %1454 = vmatpush.msra.mxu0 %v1453
    %v1455 = vand.u32 %v1175, 4294901760
    %v1456 = vsub.f32 %v1175, %v1455
    %v1457 = vand.u32 %v1456, 4294901760
    %1458 = vmatpush.msra.mxu0 %v1457
    %v1459 = vand.u32 %v1174, 4294901760
    %v1460 = vsub.f32 %v1174, %v1459
    %v1461 = vand.u32 %v1460, 4294901760
    %1462 = vmatpush.msra.mxu0 %v1461
    %v1463 = vand.u32 %v1173, 4294901760
    %v1464 = vsub.f32 %v1173, %v1463
    %v1465 = vand.u32 %v1464, 4294901760
    %1466 = vmatpush.msra.mxu0 %v1465
    %v1467 = vand.u32 %v1172, 4294901760
    %v1468 = vsub.f32 %v1172, %v1467
    %v1469 = vand.u32 %v1468, 4294901760
    %1470 = vmatpush.msra.mxu0 %v1469
    %v1471 = vand.u32 %v1171, 4294901760
    %v1472 = vsub.f32 %v1171, %v1471
    %v1473 = vand.u32 %v1472, 4294901760
    %1474 = vmatpush.msra.mxu0 %v1473
    %v1475 = vand.u32 %v1170, 4294901760
    %v1476 = vsub.f32 %v1170, %v1475
    %v1477 = vand.u32 %v1476, 4294901760
    %1478 = vmatpush.msra.mxu0 %v1477
    %v1479 = vand.u32 %v1169, 4294901760
    %v1480 = vsub.f32 %v1169, %v1479
    %v1481 = vand.u32 %v1480, 4294901760
    %1482 = vmatpush.msra.mxu0 %v1481
    %v1483 = vand.u32 %v1168, 4294901760
    %v1484 = vsub.f32 %v1168, %v1483
    %v1485 = vand.u32 %v1484, 4294901760
    %1486 = vmatpush.msra.mxu0 %v1485
    %v1487 = vand.u32 %v1167, 4294901760
    %1488 = vmatmul.f32.gmra.mxu0 %v1487
    %v1489 = vpop.f32.mrf.mxu0
    %v1490 = vadd.f32 %v1421, %v1489
    %1491 = vdwg.mxu0
    %v1492 = vand.u32 %v1183, 4294901760
    %1493 = vmatpush.msra.mxu0 %v1492
    %v1494 = vand.u32 %v1182, 4294901760
    %1495 = vmatpush.msra.mxu0 %v1494
    %v1496 = vand.u32 %v1181, 4294901760
    %1497 = vmatpush.msra.mxu0 %v1496
    %v1498 = vand.u32 %v1180, 4294901760
    %1499 = vmatpush.msra.mxu0 %v1498
    %v1500 = vand.u32 %v1179, 4294901760
    %1501 = vmatpush.msra.mxu0 %v1500
    %v1502 = vand.u32 %v1178, 4294901760
    %1503 = vmatpush.msra.mxu0 %v1502
    %v1504 = vand.u32 %v1177, 4294901760
    %1505 = vmatpush.msra.mxu0 %v1504
    %v1506 = vand.u32 %v1176, 4294901760
    %1507 = vmatpush.msra.mxu0 %v1506
    %v1508 = vand.u32 %v1175, 4294901760
    %1509 = vmatpush.msra.mxu0 %v1508
    %v1510 = vand.u32 %v1174, 4294901760
    %1511 = vmatpush.msra.mxu0 %v1510
    %v1512 = vand.u32 %v1173, 4294901760
    %1513 = vmatpush.msra.mxu0 %v1512
    %v1514 = vand.u32 %v1172, 4294901760
    %1515 = vmatpush.msra.mxu0 %v1514
    %v1516 = vand.u32 %v1171, 4294901760
    %1517 = vmatpush.msra.mxu0 %v1516
    %v1518 = vand.u32 %v1170, 4294901760
    %1519 = vmatpush.msra.mxu0 %v1518
    %v1520 = vand.u32 %v1169, 4294901760
    %1521 = vmatpush.msra.mxu0 %v1520
    %v1522 = vand.u32 %v1168, 4294901760
    %1523 = vmatpush.msra.mxu0 %v1522
    %v1524 = vand.u32 %v1167, 4294901760
    %1525 = vmatmul.f32.gmra.mxu0 %v1524
    %v1526 = vpop.f32.mrf.mxu0
    %v1527 = vadd.f32 %v1490, %v1526
    %1528 = vdwg.mxu0
    %1529 = vst.msk [vmem:[#allocation5] sm:$0xff] %vm58, %v1527
    // Predicated region
    $region34: #{tpu_custom_call.1} parent=1 // pred_check
      _
    $region35: #{tpu_custom_call.1} parent=1 // pred_check_branch
      %1531 = sbr.rel (0) target = $region37
    $region36: #{tpu_custom_call.1} parent=1 // pred_region
      %1533 = vsyncadd [#allocation4], 0
      %s1535 = sshll.u32 [#allocation5], 4
      %s1536 = int_to_ptr.vmem [resolvable:$true] %s1535
      %s1537 = sshll.u32 %s7, 4
      %s1538 = int_to_ptr.hbm [resolvable:$true] %s1537
      %1540 = dma.vmem_to_hbm [thread:$0]  %s1536, 128, %s1538, [#allocation4]
    $region37: #{tpu_custom_call.1} parent=1 // pred_fallthru
      _
    // Predicated region
    $region38: #{tpu_custom_call.1} parent=1 // pred_check
      _
    $region39: #{tpu_custom_call.1} parent=1 // pred_check_branch
      %1542 = sbr.rel (0) target = $region41
    $region40: #{tpu_custom_call.1} parent=1 // pred_region
      %1544 = dma.done [#allocation4], 128
    $region41: #{tpu_custom_call.1} parent=1 // pred_fallthru
      _
    %1545 = vsyncpa [#allocation3], 1
    %1546 = vsyncpa [#allocation4], 1

</llo_original>
